<compile_context>
chip_gen: v7x
topology: tpu7x:2x2x1
jax: 0.10.0
libtpu: 0.0.40
codegen_flags: <defaults>
</compile_context>

<pallas_src>
import functools

import jax
import jax.numpy as jnp
from jax import lax
from jax.experimental import pallas as pl
from jax.experimental.pallas import tpu as pltpu


def _simloss_kernel(xr_ref, xp_ref, xc_ref, o_ref,
                    nrm_r, numq, den_acc,
                    *, tau, eps, approx_recip, gram_dtype):
    i = pl.program_id(0)          # row block
    j = pl.program_id(1)          # col block (reduction axis)
    nj = pl.num_programs(1)
    inv_tau = 1.0 / tau

    xr = xr_ref[...]                                            # (T, Dp) f32 row block

    # ---- once per row block: row norms, positive-pair numerator, den init ----
    @pl.when(j == 0)
    def _():
        xp = xp_ref[...]                                        # partner rows (k + N/2) mod N
        nr2 = jnp.sum(xr * xr, axis=1, keepdims=True)           # (T, 1)
        np2 = jnp.sum(xp * xp, axis=1, keepdims=True)           # (T, 1)
        nrm_r[...] = jnp.sqrt(nr2)
        pair_dot = jnp.sum(xr * xp, axis=1, keepdims=True)      # (T, 1)
        # NOTE: matches the PyTorch module -- numerator uses norm_i*norm_j WITHOUT eps.
        numq[...] = pair_dot / (jnp.sqrt(nr2) * jnp.sqrt(np2)) * inv_tau
        den_acc[...] = jnp.zeros_like(den_acc)

    # ---- per (row-block, col-block): Gram tile + online denominator ----
    xc = xc_ref[...]                                            # (T, Dp) f32 col block
    s = lax.dot_general(xr.astype(gram_dtype), xc.astype(gram_dtype),
                        (((1,), (1,)), ((), ())),               # xr @ xc.T on the MXU,
                        preferred_element_type=jnp.float32)     # no explicit transpose
    ones_row = jnp.ones((1, xc.shape[1]), dtype=jnp.float32)
    nc_row = jnp.sqrt(lax.dot_general(ones_row, xc * xc,        # (1, T) column norms,
                                      (((1,), (1,)), ((), ())), # lane-oriented (no relayout)
                                      preferred_element_type=jnp.float32))
    nm = nrm_r[...] * nc_row                                    # (T, T) norm outer product
    inv_nm = pl.reciprocal(nm + eps, approx=approx_recip)       # EUP reciprocal, VALU muls
    den_acc[...] += jnp.sum(jnp.exp(s * inv_nm * inv_tau), axis=1, keepdims=True)

    # ---- diagonal correction: torch zeroes the diagonal of den_mat, so the self-term
    #      must contribute exp(0)=1 instead of exp(||x||^2/(||x||^2+eps)/tau). ----
    @pl.when(i == j)
    def _():
        nr2 = nrm_r[...] * nrm_r[...]
        self_term = jnp.exp(nr2 * pl.reciprocal(nr2 + eps, approx=approx_recip) * inv_tau)
        den_acc[...] += 1.0 - self_term

    # ---- finalize this row block: -log(exp(num/tau)/den) == log(den) - num/tau ----
    @pl.when(j == nj - 1)
    def _():
        o_ref[...] = jnp.log(den_acc[...]) - numq[...]


def _pick_tile(n_rows, d_padded, vmem_budget=12 << 20):
    """Largest square tile T that divides N/2 (so partner rows form a whole block),
    is sublane-aligned, and keeps the per-step working set well under the scoped
    VMEM defaults of all TPU generations (v5e 16 MiB / v6e 32 MiB / v7x 32 MiB)."""
    half = n_rows // 2
    candidates = [t for t in (512, 256, 128, 64, 32, 16, 8) if half % t == 0]
    if not candidates:
        # TODO(synk): support N/2 not a multiple of 8 via row masking of the last block.
        raise ValueError(f"SimLoss kernel requires N even with N/2 a multiple of 8 (got N={n_rows}).")
    for t in candidates:
        # 3 double-buffered (T, Dp) input blocks + ~5 live (T, T) f32 intermediates
        if 3 * 2 * t * d_padded * 4 + 5 * t * t * 4 <= vmem_budget:
            return t
    return candidates[-1]


def sim_loss(batch, *, tau=1.0, eps=1e-6, approx_recip=True, gram_dtype=jnp.float32):
    """batch: (N, D) float array, N even.  Returns the scalar SimLoss (f32)."""
    x = jnp.asarray(batch, jnp.float32)
    n, d = x.shape
    if n % 2:
        raise ValueError("SimLoss requires an even batch size.")

    # Pad the feature dim up to a lane-aligned multiple of 128; zero columns change
    # neither the dot products nor the row norms.
    dp = max(128, ((d + 127) // 128) * 128)
    if dp != d:
        x = jnp.pad(x, ((0, 0), (0, dp - d)))

    t = _pick_tile(n, dp)
    g = n // t                      # number of row/col blocks
    half_blocks = (n // 2) // t     # block offset of the positive partner rows

    kernel = functools.partial(_simloss_kernel, tau=float(tau), eps=float(eps),
                               approx_recip=approx_recip, gram_dtype=gram_dtype)

    per_row = pl.pallas_call(
        kernel,
        out_shape=jax.ShapeDtypeStruct((n, 1), jnp.float32),
        grid_spec=pltpu.PrefetchScalarGridSpec(
            num_scalar_prefetch=0,
            grid=(g, g),
            in_specs=[
                pl.BlockSpec((t, dp), lambda i, j: (i, 0)),                      # rows of this block
                pl.BlockSpec((t, dp), lambda i, j: ((i + half_blocks) % g, 0)),  # partner rows (k+N/2)%N
                pl.BlockSpec((t, dp), lambda i, j: (j, 0)),                      # column block
            ],
            out_specs=pl.BlockSpec((t, 1), lambda i, j: (i, 0)),
            scratch_shapes=[
                pltpu.VMEM((t, 1), jnp.float32),   # row norms
                pltpu.VMEM((t, 1), jnp.float32),   # num / tau
                pltpu.VMEM((t, 1), jnp.float32),   # online denominator accumulator
            ],
        ),
        compiler_params=pltpu.CompilerParams(
            dimension_semantics=("parallel", "arbitrary")),
        cost_estimate=pl.CostEstimate(
            flops=2 * n * n * dp,
            transcendentals=n * n,
            bytes_accessed=3 * n * dp * 4 + n * 4),
    )(x, x, x)

    return jnp.sum(per_row) / n


def _sim_loss_ref(batch, tau=1.0, eps=1e-6):
    """Pure-JAX reference matching the PyTorch forward exactly (incl. reorder)."""
    x = jnp.asarray(batch, jnp.float32)
    n = x.shape[0]
    half = n // 2
    idx = jnp.stack([jnp.arange(half), jnp.arange(half) + half], axis=1).reshape(-1)
    x = x[idx]
    b = x @ x.T
    norm = jnp.linalg.norm(x, axis=1, keepdims=True)
    nm = norm @ norm.T
    den_mat = (1.0 - jnp.eye(n)) * b / (nm + eps)
    den = jnp.sum(jnp.exp(den_mat / tau), axis=1)
    k = jnp.arange(n)
    i = (k // 2) * 2
    j = i + 1
    num = b[i, j] / nm[i, j]
    return jnp.sum(-jnp.log(jnp.exp(num / tau) / den)) / n


if __name__ == "__main__":
    key = jax.random.PRNGKey(0)
    N, D = 256, 96   # 128 positive pairs, 96-dim embeddings (exercises D->128 padding, 2x2 grid)
    batch = jax.random.normal(key, (N, D), dtype=jnp.float32)

    loss = jax.block_until_ready(sim_loss(batch))
    ref = jax.block_until_ready(_sim_loss_ref(batch))

    assert jnp.isfinite(loss), "loss is not finite"
    # Tolerance accounts for the approximate EUP reciprocal on the denominator path
    # (set approx_recip=False for bit-tighter agreement with the f32 reference).
    assert jnp.allclose(loss, ref, rtol=2e-3, atol=2e-3), (loss, ref)
    print("KERNEL_OK")
</pallas_src>

<mosaic_0001>
module attributes {stable_mosaic.version = 11 : i64} {
  func.func @_simloss_kernel(%arg0: i32, %arg1: i32, %arg2: memref<128x128xf32, #tpu.memory_space<vmem>>, %arg3: memref<128x128xf32, #tpu.memory_space<vmem>>, %arg4: memref<128x128xf32, #tpu.memory_space<vmem>>, %arg5: memref<128x1xf32, #tpu.memory_space<vmem>>, %arg6: memref<128x1xf32, #tpu.memory_space<vmem>>, %arg7: memref<128x1xf32, #tpu.memory_space<vmem>>, %arg8: memref<128x1xf32, #tpu.memory_space<vmem>>) attributes {dimension_semantics = [#tpu.dimension_semantics<parallel>, #tpu.dimension_semantics<arbitrary>], iteration_bounds = array<i64: 2, 2>, scalar_prefetch = 0 : i64, scratch_operands = 3 : i64, tpu.core_type = #tpu.core_type<tc>, window_params = [{transform_indices = @transform_0, window_bounds = array<i64: 128, 128>}, {transform_indices = @transform_1, window_bounds = array<i64: 128, 128>}, {transform_indices = @transform_2, window_bounds = array<i64: 128, 128>}, {transform_indices = @transform_3, window_bounds = array<i64: 128, 1>}]} {
    %c0 = arith.constant 0 : index
    %c0_0 = arith.constant 0 : index
    %0 = vector.load %arg2[%c0, %c0_0] : memref<128x128xf32, #tpu.memory_space<vmem>>, vector<128x128xf32>
    %c0_i32 = arith.constant 0 : i32
    %1 = arith.cmpi eq, %arg1, %c0_i32 : i32
    %2 = arith.extui %1 : i1 to i32
    %c0_i32_1 = arith.constant 0 : i32
    %3 = arith.cmpi ne, %2, %c0_i32_1 : i32
    scf.if %3 {
      %c0_17 = arith.constant 0 : index
      %c0_18 = arith.constant 0 : index
      %32 = vector.load %arg3[%c0_17, %c0_18] : memref<128x128xf32, #tpu.memory_space<vmem>>, vector<128x128xf32>
      %33 = arith.mulf %0, %0 : vector<128x128xf32>
      %cst_19 = arith.constant dense<0.000000e+00> : vector<128xf32>
      %34 = vector.multi_reduction <add>, %33, %cst_19 [1] : vector<128x128xf32> to vector<128xf32>
      %35 = vector.shape_cast %34 : vector<128xf32> to vector<128x1xf32>
      %36 = arith.mulf %32, %32 : vector<128x128xf32>
      %cst_20 = arith.constant dense<0.000000e+00> : vector<128xf32>
      %37 = vector.multi_reduction <add>, %36, %cst_20 [1] : vector<128x128xf32> to vector<128xf32>
      %38 = vector.shape_cast %37 : vector<128xf32> to vector<128x1xf32>
      %39 = math.sqrt %35 : vector<128x1xf32>
      %c0_21 = arith.constant 0 : index
      %c0_22 = arith.constant 0 : index
      %40 = vector.load %arg6[%c0_21, %c0_22] : memref<128x1xf32, #tpu.memory_space<vmem>>, vector<128x1xf32>
      tpu.vector_store %arg6[%c0_21, %c0_22], %39 {strides = array<i32>} : memref<128x1xf32, #tpu.memory_space<vmem>>, vector<128x1xf32>,
      %41 = arith.mulf %0, %32 : vector<128x128xf32>
      %cst_23 = arith.constant dense<0.000000e+00> : vector<128xf32>
      %42 = vector.multi_reduction <add>, %41, %cst_23 [1] : vector<128x128xf32> to vector<128xf32>
      %43 = vector.shape_cast %42 : vector<128xf32> to vector<128x1xf32>
      %44 = math.sqrt %35 : vector<128x1xf32>
      %45 = math.sqrt %38 : vector<128x1xf32>
      %46 = arith.mulf %44, %45 : vector<128x1xf32>
      %47 = arith.divf %43, %46 : vector<128x1xf32>
      %cst_24 = arith.constant 1.000000e+00 : f32
      %48 = vector.broadcast %cst_24 : f32 to vector<128x1xf32>
      %49 = arith.mulf %47, %48 : vector<128x1xf32>
      %c0_25 = arith.constant 0 : index
      %c0_26 = arith.constant 0 : index
      %50 = vector.load %arg7[%c0_25, %c0_26] : memref<128x1xf32, #tpu.memory_space<vmem>>, vector<128x1xf32>
      tpu.vector_store %arg7[%c0_25, %c0_26], %49 {strides = array<i32>} : memref<128x1xf32, #tpu.memory_space<vmem>>, vector<128x1xf32>,
      %cst_27 = arith.constant 0.000000e+00 : f32
      %51 = vector.broadcast %cst_27 : f32 to vector<128x1xf32>
      %c0_28 = arith.constant 0 : index
      %c0_29 = arith.constant 0 : index
      %52 = vector.load %arg8[%c0_28, %c0_29] : memref<128x1xf32, #tpu.memory_space<vmem>>, vector<128x1xf32>
      tpu.vector_store %arg8[%c0_28, %c0_29], %51 {strides = array<i32>} : memref<128x1xf32, #tpu.memory_space<vmem>>, vector<128x1xf32>,
    } else {
    }
    %c0_2 = arith.constant 0 : index
    %c0_3 = arith.constant 0 : index
    %4 = vector.load %arg4[%c0_2, %c0_3] : memref<128x128xf32, #tpu.memory_space<vmem>>, vector<128x128xf32>
    %cst = arith.constant dense<0.000000e+00> : vector<128x128xf32>
    %5 = tpu.matmul %0, %4, %cst {dimension_numbers = #tpu.dot_dimension_numbers<[1], [1], [0], [0], [0, 0, 1, 0], [], []>} : vector<128x128xf32>, vector<128x128xf32>, vector<128x128xf32> -> vector<128x128xf32>
    %cst_4 = arith.constant 1.000000e+00 : f32
    %6 = vector.broadcast %cst_4 : f32 to vector<1x128xf32>
    %7 = arith.mulf %4, %4 : vector<128x128xf32>
    %cst_5 = arith.constant dense<0.000000e+00> : vector<1x128xf32>
    %8 = tpu.matmul %6, %7, %cst_5 {dimension_numbers = #tpu.dot_dimension_numbers<[1], [1], [0], [0], [0, 0, 1, 0], [], []>} : vector<1x128xf32>, vector<128x128xf32>, vector<1x128xf32> -> vector<1x128xf32>
    %9 = math.sqrt %8 : vector<1x128xf32>
    %c0_6 = arith.constant 0 : index
    %c0_7 = arith.constant 0 : index
    %10 = vector.load %arg6[%c0_6, %c0_7] : memref<128x1xf32, #tpu.memory_space<vmem>>, vector<128x1xf32>
    %11 = vector.broadcast %10 : vector<128x1xf32> to vector<128x128xf32>
    %12 = vector.broadcast %9 : vector<1x128xf32> to vector<128x128xf32>
    %13 = arith.mulf %11, %12 : vector<128x128xf32>
    %cst_8 = arith.constant 9.99999997E-7 : f32
    %14 = vector.broadcast %cst_8 : f32 to vector<128x128xf32>
    %15 = arith.addf %13, %14 : vector<128x128xf32>
    %16 = tpu.reciprocal %15 {approx = true} : vector<128x128xf32> -> vector<128x128xf32>
    %c0_9 = arith.constant 0 : index
    %c0_10 = arith.constant 0 : index
    %17 = vector.load %arg8[%c0_9, %c0_10] : memref<128x1xf32, #tpu.memory_space<vmem>>, vector<128x1xf32>
    %18 = arith.mulf %5, %16 : vector<128x128xf32>
    %cst_11 = arith.constant 1.000000e+00 : f32
    %19 = vector.broadcast %cst_11 : f32 to vector<128x128xf32>
    %20 = arith.mulf %18, %19 : vector<128x128xf32>
    %21 = math.exp %20 : vector<128x128xf32>
    %cst_12 = arith.constant dense<0.000000e+00> : vector<128xf32>
    %22 = vector.multi_reduction <add>, %21, %cst_12 [1] : vector<128x128xf32> to vector<128xf32>
    %23 = vector.shape_cast %22 : vector<128xf32> to vector<128x1xf32>
    %24 = arith.addf %17, %23 : vector<128x1xf32>
    %c0_13 = arith.constant 0 : index
    %c0_14 = arith.constant 0 : index
    %25 = vector.load %arg8[%c0_13, %c0_14] : memref<128x1xf32, #tpu.memory_space<vmem>>, vector<128x1xf32>
    tpu.vector_store %arg8[%c0_13, %c0_14], %24 {strides = array<i32>} : memref<128x1xf32, #tpu.memory_space<vmem>>, vector<128x1xf32>,
    %26 = arith.cmpi eq, %arg0, %arg1 : i32
    %27 = arith.extui %26 : i1 to i32
    %c0_i32_15 = arith.constant 0 : i32
    %28 = arith.cmpi ne, %27, %c0_i32_15 : i32
    scf.if %28 {
      %c0_17 = arith.constant 0 : index
      %c0_18 = arith.constant 0 : index
      %32 = vector.load %arg6[%c0_17, %c0_18] : memref<128x1xf32, #tpu.memory_space<vmem>>, vector<128x1xf32>
      %c0_19 = arith.constant 0 : index
      %c0_20 = arith.constant 0 : index
      %33 = vector.load %arg6[%c0_19, %c0_20] : memref<128x1xf32, #tpu.memory_space<vmem>>, vector<128x1xf32>
      %34 = arith.mulf %32, %33 : vector<128x1xf32>
      %cst_21 = arith.constant 9.99999997E-7 : f32
      %35 = vector.broadcast %cst_21 : f32 to vector<128x1xf32>
      %36 = arith.addf %34, %35 : vector<128x1xf32>
      %37 = tpu.reciprocal %36 {approx = true} : vector<128x1xf32> -> vector<128x1xf32>
      %38 = arith.mulf %34, %37 : vector<128x1xf32>
      %cst_22 = arith.constant 1.000000e+00 : f32
      %39 = vector.broadcast %cst_22 : f32 to vector<128x1xf32>
      %40 = arith.mulf %38, %39 : vector<128x1xf32>
      %41 = math.exp %40 : vector<128x1xf32>
      %c0_23 = arith.constant 0 : index
      %c0_24 = arith.constant 0 : index
      %42 = vector.load %arg8[%c0_23, %c0_24] : memref<128x1xf32, #tpu.memory_space<vmem>>, vector<128x1xf32>
      %cst_25 = arith.constant 1.000000e+00 : f32
      %43 = vector.broadcast %cst_25 : f32 to vector<128x1xf32>
      %44 = arith.subf %43, %41 : vector<128x1xf32>
      %45 = arith.addf %42, %44 : vector<128x1xf32>
      %c0_26 = arith.constant 0 : index
      %c0_27 = arith.constant 0 : index
      %46 = vector.load %arg8[%c0_26, %c0_27] : memref<128x1xf32, #tpu.memory_space<vmem>>, vector<128x1xf32>
      tpu.vector_store %arg8[%c0_26, %c0_27], %45 {strides = array<i32>} : memref<128x1xf32, #tpu.memory_space<vmem>>, vector<128x1xf32>,
    } else {
    }
    %c1_i32 = arith.constant 1 : i32
    %29 = arith.cmpi eq, %arg1, %c1_i32 : i32
    %30 = arith.extui %29 : i1 to i32
    %c0_i32_16 = arith.constant 0 : i32
    %31 = arith.cmpi ne, %30, %c0_i32_16 : i32
    scf.if %31 {
      %c0_17 = arith.constant 0 : index
      %c0_18 = arith.constant 0 : index
      %32 = vector.load %arg8[%c0_17, %c0_18] : memref<128x1xf32, #tpu.memory_space<vmem>>, vector<128x1xf32>
      %33 = math.log %32 : vector<128x1xf32>
      %c0_19 = arith.constant 0 : index
      %c0_20 = arith.constant 0 : index
      %34 = vector.load %arg7[%c0_19, %c0_20] : memref<128x1xf32, #tpu.memory_space<vmem>>, vector<128x1xf32>
      %35 = arith.subf %33, %34 : vector<128x1xf32>
      %c0_21 = arith.constant 0 : index
      %c0_22 = arith.constant 0 : index
      %36 = vector.load %arg5[%c0_21, %c0_22] : memref<128x1xf32, #tpu.memory_space<vmem>>, vector<128x1xf32>
      tpu.vector_store %arg5[%c0_21, %c0_22], %35 {strides = array<i32>} : memref<128x1xf32, #tpu.memory_space<vmem>>, vector<128x1xf32>,
    } else {
    }
    return
  }
  func.func @transform_0(%arg0: i32, %arg1: i32) -> (i32, i32) {
    %c0_i32 = arith.constant 0 : i32
    %c0_i32_0 = arith.constant 0 : i32
    return %arg0, %c0_i32 : i32, i32
  }
  func.func @transform_1(%arg0: i32, %arg1: i32) -> (i32, i32) {
    %c1_i32 = arith.constant 1 : i32
    %0 = arith.addi %arg0, %c1_i32 : i32
    %c2_i32 = arith.constant 2 : i32
    %c0_i32 = arith.constant 0 : i32
    %1 = arith.cmpi eq, %c2_i32, %c0_i32 : i32
    %c1_i32_0 = arith.constant 1 : i32
    %2 = arith.select %1, %c1_i32_0, %c2_i32 : i32
    %3 = arith.remsi %0, %2 : i32
    %c0_i32_1 = arith.constant 0 : i32
    %4 = arith.cmpi ne, %3, %c0_i32_1 : i32
    %c0_i32_2 = arith.constant 0 : i32
    %5 = arith.cmpi slt, %3, %c0_i32_2 : i32
    %c0_i32_3 = arith.constant 0 : i32
    %6 = arith.cmpi slt, %2, %c0_i32_3 : i32
    %7 = arith.xori %5, %6 : i1
    %8 = arith.andi %7, %4 : i1
    %9 = arith.addi %3, %2 : i32
    %10 = arith.select %8, %9, %3 : i32
    %c0_i32_4 = arith.constant 0 : i32
    %c0_i32_5 = arith.constant 0 : i32
    return %10, %c0_i32_4 : i32, i32
  }
  func.func @transform_2(%arg0: i32, %arg1: i32) -> (i32, i32) {
    %c0_i32 = arith.constant 0 : i32
    %c0_i32_0 = arith.constant 0 : i32
    return %arg1, %c0_i32 : i32, i32
  }
  func.func @transform_3(%arg0: i32, %arg1: i32) -> (i32, i32) {
    %c0_i32 = arith.constant 0 : i32
    %c0_i32_0 = arith.constant 0 : i32
    return %arg0, %c0_i32 : i32, i32
  }
}

</mosaic_0001>

<llo_original>
// kernel: tpu_custom_call.1
$region0: #{tpu_custom_call.1}
  #allocation0 [shape = 'u32[]', space=smem, size = 0x4, offset = 0x4, fixed_abs, tag = 'smem constant byte address 0x4 - core index']
  #allocation1 [shape = 'u32[144,128]{1,0:T(1,128)}', space=vmem, size = 0x12000, scoped, tag = 'internal scratch']
  #allocation2 [shape = 'f32[128,1]{1,0:T(8,128)}', space=vmem, size = 0x10000, scoped, tag = 'scratch operand']
  #allocation3 [shape = 'f32[128,1]{1,0:T(8,128)}', space=vmem, size = 0x10000, scoped, tag = 'scratch operand']
  #allocation4 [shape = 'f32[128,1]{1,0:T(8,128)}', space=vmem, size = 0x10000, scoped, tag = 'scratch operand']
  %s0 = inlined_call_operand.hbm [shape: f32[256,128], index: 0, kind: input, shape index: {}]
  %s1 = inlined_call_operand.hbm [shape: f32[256,128], index: 1, kind: input, shape index: {}]
  %s2 = inlined_call_operand.hbm [shape: f32[256,128], index: 2, kind: input, shape index: {}]
  %s3 = inlined_call_operand.vmem [shape: f32[256,1], index: 3, kind: output, shape index: {}]
  %s4 = sld [smem:[#allocation0]]
  $region69: #{tpu_custom_call.1} parent=0
    _
  %s6 = ssub.s32 1, %s4
  %s7 = scalar_select 0, %s6, %s4
  $region1: #{tpu_custom_call.1} parent=0
    #allocation5 [shape = 'u8[131072]{0}', space=vmem, size = 0x20000, scoped, tag = 'input window, operand 0']
    #allocation6 [shape = 's32[2]{0}', space=sflag, size = 0x8, scoped, tag = 'scoped memory for tpu_custom_call.1']
    #allocation7 [shape = 'u8[131072]{0}', space=vmem, size = 0x20000, scoped, tag = 'input window, operand 1']
    #allocation8 [shape = 's32[2]{0}', space=sflag, size = 0x8, scoped, tag = 'scoped memory for tpu_custom_call.1']
    #allocation9 [shape = 'u8[131072]{0}', space=vmem, size = 0x20000, scoped, tag = 'input window, operand 2']
    %8 = vsyncpa [#allocation6], 0
    %s9 = scalar_lea.sflag [#allocation6], 1
    %10 = vsyncpa %s9, 0
    %11 = vsyncpa [#allocation8], 0
    %s12 = scalar_lea.sflag [#allocation8], 1
    %13 = vsyncpa %s12, 0
    loop: start=0, step=1, limit=6
    $region2: #{tpu_custom_call.1} parent=1 // loop_pre_header
      _
    $region3: #{tpu_custom_call.1} parent=1 // loop_header
      %s15 = sphi 0, %s19
      %p16 = scmp.ge.s32.totalorder %s15, 6
      %s22 = sphi 0, %s34
      %s23 = sphi 0, %s30
      %s24 = sphi 0, %s22
      %s25 = sphi 0, %s23
      %s26 = sphi 0, %s24
      %s27 = sphi 0, %s25
      %s37 = sphi 0, %s39
      %s40 = sphi 0, %s37
      %s41 = sphi 0, %s40
      %s57 = sphi 0, %s41
      %s89 = sphi 0, %s91
      %s92 = sphi 0, %s89
      %s93 = sphi 0, %s92
      %s109 = sphi 0, %s93
      %s115 = sphi 0, %s117
      %s118 = sphi 0, %s115
      %s119 = sphi 0, %s118
      %s135 = sphi 0, %s119
      %s141 = sphi 0, %s143
      %s144 = sphi 0, %s141
      %s145 = sphi 0, %s144
      %s161 = sphi 0, %s145
    $region4: #{tpu_custom_call.1} parent=1 // loop_header_branch
      %18 = sbr.rel (%p16) target = $region8
    $region5: #{tpu_custom_call.1} parent=1 // loop_body
      %s20 = ssub.s32 %s15, 1
      %s21 = ssub.s32 %s15, 2
      %s28 = sadd.s32 1, %s23
      %p29 = scmp.ge.s32.totalorder %s28, 2
      %s30 = scalar_select %p29, 0, %s28
      %s31 = sadd.s32 1, %s22
      %s32 = scalar_select %p29, %s31, %s22
      %p33 = scmp.ge.s32.totalorder %s32, 2
      %s34 = scalar_select %p33, 0, %s32
      %s35 = ssub.s32 %s22, %s34
      %p36 = scmp.eq.s32.totalorder %s35, 0
      %s38 = sadd.s32 %s37, 1
      %s39 = scalar_select %p36, %s37, %s38
      %p42 = pneg %p36
      %p43 = scmp.eq.s32.totalorder %s15, 3
      %p44 = por %p42, %p43
      %p45 = scmp.ne.s32.totalorder %s37, %s40
      %p46 = scmp.eq.s32.totalorder %s15, 0
      %p47 = por %p45, %p46
      %p48 = scmp.ne.s32.totalorder %s37, %s40
      %p49 = scmp.eq.s32.totalorder %s20, 3
      %p50 = por %p48, %p49
      %p51 = scmp.ne.s32.totalorder %s40, %s41
      %p52 = scmp.eq.s32.totalorder %s20, 0
      %p53 = por %p51, %p52
      %p54 = scmp.ne.s32.totalorder %s40, %s41
      %p55 = scmp.eq.s32.totalorder %s21, 3
      %p56 = por %p54, %p55
      %p58 = scmp.ne.s32.totalorder %s41, %s57
      %p59 = scmp.eq.s32.totalorder %s21, 0
      %p60 = por %p58, %p59
      %s61 = sadd.s32 %s22, 1
      %p62 = scmp.lt.s32.totalorder %s61, 0
      %s63 = ssub.s32 0, %s61
      %s64 = scalar_select %p62, %s63, %s61
      %s65 = sand.u32 %s64, 1
      %s66 = ssub.s32 0, %s65
      %s67 = scalar_select %p62, %s66, %s65
      %p68 = scmp.ne.s32.totalorder %s67, 0
      %p69 = scmp.lt.s32.totalorder %s67, 0
      %p70 = pnand %p69, %p68
      %p71 = pneg %p70
      %s72 = sadd.s32 %s67, 2
      %s73 = scalar_select %p71, %s72, %s67
      %s74 = sadd.s32 %s34, 1
      %p75 = scmp.lt.s32.totalorder %s74, 0
      %s76 = ssub.s32 0, %s74
      %s77 = scalar_select %p75, %s76, %s74
      %s78 = sand.u32 %s77, 1
      %s79 = ssub.s32 0, %s78
      %s80 = scalar_select %p75, %s79, %s78
      %p81 = scmp.ne.s32.totalorder %s80, 0
      %p82 = scmp.lt.s32.totalorder %s80, 0
      %p83 = pnand %p82, %p81
      %p84 = pneg %p83
      %s85 = sadd.s32 %s80, 2
      %s86 = scalar_select %p84, %s85, %s80
      %s87 = ssub.s32 %s73, %s86
      %p88 = scmp.eq.s32.totalorder %s87, 0
      %s90 = sadd.s32 %s89, 1
      %s91 = scalar_select %p88, %s89, %s90
      %p94 = pneg %p88
      %p95 = scmp.eq.s32.totalorder %s15, 3
      %p96 = por %p94, %p95
      %p97 = scmp.ne.s32.totalorder %s89, %s92
      %p98 = scmp.eq.s32.totalorder %s15, 0
      %p99 = por %p97, %p98
      %p100 = scmp.ne.s32.totalorder %s89, %s92
      %p101 = scmp.eq.s32.totalorder %s20, 3
      %p102 = por %p100, %p101
      %p103 = scmp.ne.s32.totalorder %s92, %s93
      %p104 = scmp.eq.s32.totalorder %s20, 0
      %p105 = por %p103, %p104
      %p106 = scmp.ne.s32.totalorder %s92, %s93
      %p107 = scmp.eq.s32.totalorder %s21, 3
      %p108 = por %p106, %p107
      %p110 = scmp.ne.s32.totalorder %s93, %s109
      %p111 = scmp.eq.s32.totalorder %s21, 0
      %p112 = por %p110, %p111
      %s113 = ssub.s32 %s23, %s30
      %p114 = scmp.eq.s32.totalorder %s113, 0
      %s116 = sadd.s32 %s115, 1
      %s117 = scalar_select %p114, %s115, %s116
      %p120 = pneg %p114
      %p121 = scmp.eq.s32.totalorder %s15, 3
      %p122 = por %p120, %p121
      %p123 = scmp.ne.s32.totalorder %s115, %s118
      %p124 = scmp.eq.s32.totalorder %s15, 0
      %p125 = por %p123, %p124
      %p126 = scmp.ne.s32.totalorder %s115, %s118
      %p127 = scmp.eq.s32.totalorder %s20, 3
      %p128 = por %p126, %p127
      %p129 = scmp.ne.s32.totalorder %s118, %s119
      %p130 = scmp.eq.s32.totalorder %s20, 0
      %p131 = por %p129, %p130
      %p132 = scmp.ne.s32.totalorder %s118, %s119
      %p133 = scmp.eq.s32.totalorder %s21, 3
      %p134 = por %p132, %p133
      %p136 = scmp.ne.s32.totalorder %s119, %s135
      %p137 = scmp.eq.s32.totalorder %s21, 0
      %p138 = por %p136, %p137
      %s139 = ssub.s32 %s22, %s34
      %p140 = scmp.eq.s32.totalorder %s139, 0
      %s142 = sadd.s32 %s141, 1
      %s143 = scalar_select %p140, %s141, %s142
      %p146 = pneg %p140
      %p147 = scmp.eq.s32.totalorder %s15, 3
      %p148 = por %p146, %p147
      %p149 = scmp.ne.s32.totalorder %s141, %s144
      %p150 = scmp.eq.s32.totalorder %s15, 0
      %p151 = por %p149, %p150
      %p152 = scmp.ne.s32.totalorder %s141, %s144
      %p153 = scmp.eq.s32.totalorder %s20, 3
      %p154 = por %p152, %p153
      %p155 = scmp.ne.s32.totalorder %s144, %s145
      %p156 = scmp.eq.s32.totalorder %s20, 0
      %p157 = por %p155, %p156
      %p158 = scmp.ne.s32.totalorder %s144, %s145
      %p159 = scmp.eq.s32.totalorder %s21, 3
      %p160 = por %p158, %p159
      %p162 = scmp.ne.s32.totalorder %s145, %s161
      %p163 = scmp.eq.s32.totalorder %s21, 0
      %p164 = por %p162, %p163
      %p165 = scmp.le.s32.totalorder 1, %s15
      %p166 = scmp.lt.s32.totalorder %s15, 5
      %p167 = pnand %p165, %p166
      %p168 = pneg %p167
      // Predicated region
      $region9: #{tpu_custom_call.1} parent=5 // pred_check
        _
      $region10: #{tpu_custom_call.1} parent=5 // pred_check_branch
        %170 = sbr.rel (%p167) target = $region12
      $region11: #{tpu_custom_call.1} parent=5 // pred_region
        %s171 = ssub.s32 %s15, 1
      $region12: #{tpu_custom_call.1} parent=5 // pred_fallthru
        _
      %p172 = scmp.lt.s32.totalorder %s15, 4
      // Predicated region
      $region13: #{tpu_custom_call.1} parent=5 // pred_check
        %p173 = pneg %p172
      $region14: #{tpu_custom_call.1} parent=5 // pred_check_branch
        %175 = sbr.rel (%p173) target = $region16
      $region15: #{tpu_custom_call.1} parent=5 // pred_region
        // Predicated region
        $region17: #{tpu_custom_call.1} parent=15 // pred_check
          %p176 = pneg %p47
        $region18: #{tpu_custom_call.1} parent=15 // pred_check_branch
          %178 = sbr.rel (%p176) target = $region20
        $region19: #{tpu_custom_call.1} parent=15 // pred_region
          %s179 = sand.u32 %s37, 1
          %s180 = scalar_lea.sflag [#allocation6], %s179
          %s181 = sand.u32 %s37, 1
          %s182 = smul.addr %s181, 128
          %s183 = scalar_lea.vmem [#allocation5], %s182
          %s184 = smul.u32 16, %s22
          %s186 = ssub.s32 2048, 2048
          %187 = vsyncadd %s180, %s186
          %s188 = smul.addr %s184, 128
          %s189 = scalar_lea.hbm %s0, %s188
          %s190 = sshll.u32 %s183, 4
          %s191 = int_to_ptr.vmem [resolvable:$true] %s190
          %196 = dma.hbm_to_vmem [thread:$0]  %s189, 2048, %s191, %s180, 128, 128, 8
        $region20: #{tpu_custom_call.1} parent=15 // pred_fallthru
          _
        // Predicated region
        $region21: #{tpu_custom_call.1} parent=15 // pred_check
          %p197 = pneg %p99
        $region22: #{tpu_custom_call.1} parent=15 // pred_check_branch
          %199 = sbr.rel (%p197) target = $region24
        $region23: #{tpu_custom_call.1} parent=15 // pred_region
          %s200 = sand.u32 %s15, 1
          %s201 = scalar_lea.sflag [#allocation8], %s200
          %s202 = sand.u32 %s89, 1
          %s203 = smul.addr %s202, 128
          %s204 = scalar_lea.vmem [#allocation7], %s203
          %s205 = sadd.s32 %s22, 1
          %p206 = scmp.lt.s32.totalorder %s205, 0
          %s207 = ssub.s32 0, %s205
          %s208 = scalar_select %p206, %s207, %s205
          %s209 = sand.u32 %s208, 1
          %s210 = ssub.s32 0, %s209
          %s211 = scalar_select %p206, %s210, %s209
          %p212 = scmp.ne.s32.totalorder %s211, 0
          %p213 = scmp.lt.s32.totalorder %s211, 0
          %p214 = pnand %p213, %p212
          %p215 = pneg %p214
          %s216 = sadd.s32 %s211, 2
          %s217 = scalar_select %p215, %s216, %s211
          %s218 = smul.u32 16, %s217
          %s220 = ssub.s32 2048, 2048
          %221 = vsyncadd %s201, %s220
          %s222 = smul.addr %s218, 128
          %s223 = scalar_lea.hbm %s1, %s222
          %s224 = sshll.u32 %s204, 4
          %s225 = int_to_ptr.vmem [resolvable:$true] %s224
          %230 = dma.hbm_to_vmem [thread:$0]  %s223, 2048, %s225, %s201, 128, 128, 8
        $region24: #{tpu_custom_call.1} parent=15 // pred_fallthru
          _
        // Predicated region
        $region25: #{tpu_custom_call.1} parent=15 // pred_check
          %p231 = pneg %p125
        $region26: #{tpu_custom_call.1} parent=15 // pred_check_branch
          %233 = sbr.rel (%p231) target = $region28
        $region27: #{tpu_custom_call.1} parent=15 // pred_region
          %s234 = sand.u32 %s15, 1
          %s235 = scalar_lea.sflag [#allocation8], %s234
          %s236 = sand.u32 %s115, 1
          %s237 = smul.addr %s236, 128
          %s238 = scalar_lea.vmem [#allocation9], %s237
          %s239 = smul.u32 16, %s23
          %s241 = ssub.s32 2048, 2048
          %242 = vsyncadd %s235, %s241
          %s243 = smul.addr %s239, 128
          %s244 = scalar_lea.hbm %s2, %s243
          %s245 = sshll.u32 %s238, 4
          %s246 = int_to_ptr.vmem [resolvable:$true] %s245
          %251 = dma.hbm_to_vmem [thread:$0]  %s244, 2048, %s246, %s235, 128, 128, 8
        $region28: #{tpu_custom_call.1} parent=15 // pred_fallthru
          _
      $region16: #{tpu_custom_call.1} parent=5 // pred_fallthru
        _
      %p252 = scmp.le.s32.totalorder 1, %s15
      %p253 = scmp.lt.s32.totalorder %s15, 5
      %p254 = pnand %p252, %p253
      %p255 = pneg %p254
      // Predicated region
      $region29: #{tpu_custom_call.1} parent=5 // pred_check
        _
      $region30: #{tpu_custom_call.1} parent=5 // pred_check_branch
        %257 = sbr.rel (%p254) target = $region32
      $region31: #{tpu_custom_call.1} parent=5 // pred_region
        %s258 = ssub.s32 %s15, 1
        %s259 = sand.u32 %s40, 1
        %s260 = scalar_lea.sflag [#allocation6], %s259
        %s261 = sand.u32 %s40, 1
        %s262 = smul.addr %s261, 128
        %s263 = scalar_lea.vmem [#allocation5], %s262
        // Predicated region
        $region33: #{tpu_custom_call.1} parent=31 // pred_check
          %p264 = pneg %p53
        $region34: #{tpu_custom_call.1} parent=31 // pred_check_branch
          %266 = sbr.rel (%p264) target = $region36
        $region35: #{tpu_custom_call.1} parent=31 // pred_region
          %267 = dma.done %s260, 2048
        $region36: #{tpu_custom_call.1} parent=31 // pred_fallthru
          _
        %s268 = sand.u32 %s20, 1
        %s269 = scalar_lea.sflag [#allocation8], %s268
        %s270 = sand.u32 %s92, 1
        %s271 = smul.addr %s270, 128
        %s272 = scalar_lea.vmem [#allocation7], %s271
        // Predicated region
        $region37: #{tpu_custom_call.1} parent=31 // pred_check
          %p273 = pneg %p105
        $region38: #{tpu_custom_call.1} parent=31 // pred_check_branch
          %275 = sbr.rel (%p273) target = $region40
        $region39: #{tpu_custom_call.1} parent=31 // pred_region
          %276 = dma.done %s269, 2048
        $region40: #{tpu_custom_call.1} parent=31 // pred_fallthru
          _
        %s277 = sand.u32 %s20, 1
        %s278 = scalar_lea.sflag [#allocation8], %s277
        %s279 = sand.u32 %s118, 1
        %s280 = smul.addr %s279, 128
        %s281 = scalar_lea.vmem [#allocation9], %s280
        // Predicated region
        $region41: #{tpu_custom_call.1} parent=31 // pred_check
          %p282 = pneg %p131
        $region42: #{tpu_custom_call.1} parent=31 // pred_check_branch
          %284 = sbr.rel (%p282) target = $region44
        $region43: #{tpu_custom_call.1} parent=31 // pred_region
          %285 = dma.done %s278, 2048
        $region44: #{tpu_custom_call.1} parent=31 // pred_fallthru
          _
        %s286 = sand.u32 %s40, 1
        %s287 = scalar_lea.sflag [#allocation6], %s286
        %s288 = sand.u32 %s40, 1
        %s289 = smul.addr %s288, 128
        %s290 = scalar_lea.vmem [#allocation5], %s289
        %p291 = pneg %p53
        %p292 = pneg %p50
        %s293 = sand.u32 %s20, 1
        %s294 = scalar_lea.sflag [#allocation8], %s293
        %s295 = sand.u32 %s92, 1
        %s296 = smul.addr %s295, 128
        %s297 = scalar_lea.vmem [#allocation7], %s296
        %p298 = pneg %p105
        %p299 = pneg %p102
        %s300 = sand.u32 %s20, 1
        %s301 = scalar_lea.sflag [#allocation8], %s300
        %s302 = sand.u32 %s118, 1
        %s303 = smul.addr %s302, 128
        %s304 = scalar_lea.vmem [#allocation9], %s303
        %p305 = pneg %p131
        %p306 = pneg %p128
        %p307 = pneg %p157
        %p308 = pneg %p154
        %s309 = smul.u32 16, %s24
        %p310 = scmp.lt.s32.totalorder %s309, 31
        %s311 = scalar_select %p310, %s309, 31
        %s312 = smul.addr %s311, 8
        %s313 = scalar_lea.vmem %s3, %s312
        %s314 = smul.u32 16, %s24
        %s315 = sadd.s32 %s24, 1
        %p316 = scmp.lt.s32.totalorder %s315, 0
        %s317 = ssub.s32 0, %s315
        %s318 = scalar_select %p316, %s317, %s315
        %s319 = sand.u32 %s318, 1
        %s320 = ssub.s32 0, %s319
        %s321 = scalar_select %p316, %s320, %s319
        %p322 = scmp.ne.s32.totalorder %s321, 0
        %p323 = scmp.lt.s32.totalorder %s321, 0
        %p324 = pnand %p323, %p322
        %p325 = pneg %p324
        %s326 = sadd.s32 %s321, 2
        %s327 = scalar_select %p325, %s326, %s321
        %s328 = smul.u32 16, %s327
        %s329 = smul.u32 16, %s25
        %s330 = smul.u32 16, %s24
        %p331 = scmp.lt.s32.totalorder %s330, 31
        %s332 = scalar_select %p331, %s330, 31
        %s333 = smul.addr %s332, 8
        %s334 = scalar_lea.vmem %s3, %s333
        %s335 = smul.u32 16, %s24
        %v336 = vld [vmem:[%s263] sm:$0xff]
        %v337 = vld [vmem:[%s263 + $0x8] sm:$0xff]
        %v338 = vld [vmem:[%s263 + $0x10] sm:$0xff]
        %v339 = vld [vmem:[%s263 + $0x18] sm:$0xff]
        %v340 = vld [vmem:[%s263 + $0x20] sm:$0xff]
        %v341 = vld [vmem:[%s263 + $0x28] sm:$0xff]
        %v342 = vld [vmem:[%s263 + $0x30] sm:$0xff]
        %v343 = vld [vmem:[%s263 + $0x38] sm:$0xff]
        %v344 = vld [vmem:[%s263 + $0x40] sm:$0xff]
        %v345 = vld [vmem:[%s263 + $0x48] sm:$0xff]
        %v346 = vld [vmem:[%s263 + $0x50] sm:$0xff]
        %v347 = vld [vmem:[%s263 + $0x58] sm:$0xff]
        %v348 = vld [vmem:[%s263 + $0x60] sm:$0xff]
        %v349 = vld [vmem:[%s263 + $0x68] sm:$0xff]
        %v350 = vld [vmem:[%s263 + $0x70] sm:$0xff]
        %v351 = vld [vmem:[%s263 + $0x78] sm:$0xff]
        %p352 = scmp.eq.s32.totalorder %s25, 0
        // Predicated region
        $region45: #{tpu_custom_call.1} parent=31 // pred_check
          %p353 = pneg %p352
        $region46: #{tpu_custom_call.1} parent=31 // pred_check_branch
          %355 = sbr.rel (%p353) target = $region48
        $region47: #{tpu_custom_call.1} parent=31 // pred_region
          %v356 = vld [vmem:[%s272] sm:$0xff]
          %v357 = vld [vmem:[%s272 + $0x8] sm:$0xff]
          %v358 = vld [vmem:[%s272 + $0x10] sm:$0xff]
          %v359 = vld [vmem:[%s272 + $0x18] sm:$0xff]
          %v360 = vld [vmem:[%s272 + $0x20] sm:$0xff]
          %v361 = vld [vmem:[%s272 + $0x28] sm:$0xff]
          %v362 = vld [vmem:[%s272 + $0x30] sm:$0xff]
          %v363 = vld [vmem:[%s272 + $0x38] sm:$0xff]
          %v364 = vld [vmem:[%s272 + $0x40] sm:$0xff]
          %v365 = vld [vmem:[%s272 + $0x48] sm:$0xff]
          %v366 = vld [vmem:[%s272 + $0x50] sm:$0xff]
          %v367 = vld [vmem:[%s272 + $0x58] sm:$0xff]
          %v368 = vld [vmem:[%s272 + $0x60] sm:$0xff]
          %v369 = vld [vmem:[%s272 + $0x68] sm:$0xff]
          %v370 = vld [vmem:[%s272 + $0x70] sm:$0xff]
          %v371 = vld [vmem:[%s272 + $0x78] sm:$0xff]
          %v372 = vmul.f32 %v336, %v336
          %v373 = vmul.f32 %v337, %v337
          %v374 = vmul.f32 %v338, %v338
          %v375 = vmul.f32 %v339, %v339
          %v376 = vmul.f32 %v340, %v340
          %v377 = vmul.f32 %v341, %v341
          %v378 = vmul.f32 %v342, %v342
          %v379 = vmul.f32 %v343, %v343
          %v380 = vmul.f32 %v344, %v344
          %v381 = vmul.f32 %v345, %v345
          %v382 = vmul.f32 %v346, %v346
          %v383 = vmul.f32 %v347, %v347
          %v384 = vmul.f32 %v348, %v348
          %v385 = vmul.f32 %v349, %v349
          %v386 = vmul.f32 %v350, %v350
          %v387 = vmul.f32 %v351, %v351
          %388 = vadd.xlane.f32.xlu0 %v372
          %v389 = vpop.xlane.xlu0 %388
          %390 = vadd.xlane.f32.xlu0 %v373
          %v391 = vpop.xlane.xlu0 %390
          %392 = vadd.xlane.f32.xlu0 %v374
          %v393 = vpop.xlane.xlu0 %392
          %394 = vadd.xlane.f32.xlu0 %v375
          %v395 = vpop.xlane.xlu0 %394
          %396 = vadd.xlane.f32.xlu0 %v376
          %v397 = vpop.xlane.xlu0 %396
          %398 = vadd.xlane.f32.xlu0 %v377
          %v399 = vpop.xlane.xlu0 %398
          %400 = vadd.xlane.f32.xlu0 %v378
          %v401 = vpop.xlane.xlu0 %400
          %402 = vadd.xlane.f32.xlu0 %v379
          %v403 = vpop.xlane.xlu0 %402
          %404 = vadd.xlane.f32.xlu0 %v380
          %v405 = vpop.xlane.xlu0 %404
          %406 = vadd.xlane.f32.xlu0 %v381
          %v407 = vpop.xlane.xlu0 %406
          %408 = vadd.xlane.f32.xlu0 %v382
          %v409 = vpop.xlane.xlu0 %408
          %410 = vadd.xlane.f32.xlu0 %v383
          %v411 = vpop.xlane.xlu0 %410
          %412 = vadd.xlane.f32.xlu0 %v384
          %v413 = vpop.xlane.xlu0 %412
          %414 = vadd.xlane.f32.xlu0 %v385
          %v415 = vpop.xlane.xlu0 %414
          %416 = vadd.xlane.f32.xlu0 %v386
          %v417 = vpop.xlane.xlu0 %416
          %418 = vadd.xlane.f32.xlu0 %v387
          %v419 = vpop.xlane.xlu0 %418
          %v420 = vmul.f32 %v356, %v356
          %v421 = vmul.f32 %v357, %v357
          %v422 = vmul.f32 %v358, %v358
          %v423 = vmul.f32 %v359, %v359
          %v424 = vmul.f32 %v360, %v360
          %v425 = vmul.f32 %v361, %v361
          %v426 = vmul.f32 %v362, %v362
          %v427 = vmul.f32 %v363, %v363
          %v428 = vmul.f32 %v364, %v364
          %v429 = vmul.f32 %v365, %v365
          %v430 = vmul.f32 %v366, %v366
          %v431 = vmul.f32 %v367, %v367
          %v432 = vmul.f32 %v368, %v368
          %v433 = vmul.f32 %v369, %v369
          %v434 = vmul.f32 %v370, %v370
          %v435 = vmul.f32 %v371, %v371
          %436 = vadd.xlane.f32.xlu0 %v420
          %v437 = vpop.xlane.xlu0 %436
          %438 = vadd.xlane.f32.xlu0 %v421
          %v439 = vpop.xlane.xlu0 %438
          %440 = vadd.xlane.f32.xlu0 %v422
          %v441 = vpop.xlane.xlu0 %440
          %442 = vadd.xlane.f32.xlu0 %v423
          %v443 = vpop.xlane.xlu0 %442
          %444 = vadd.xlane.f32.xlu0 %v424
          %v445 = vpop.xlane.xlu0 %444
          %446 = vadd.xlane.f32.xlu0 %v425
          %v447 = vpop.xlane.xlu0 %446
          %448 = vadd.xlane.f32.xlu0 %v426
          %v449 = vpop.xlane.xlu0 %448
          %450 = vadd.xlane.f32.xlu0 %v427
          %v451 = vpop.xlane.xlu0 %450
          %452 = vadd.xlane.f32.xlu0 %v428
          %v453 = vpop.xlane.xlu0 %452
          %454 = vadd.xlane.f32.xlu0 %v429
          %v455 = vpop.xlane.xlu0 %454
          %456 = vadd.xlane.f32.xlu0 %v430
          %v457 = vpop.xlane.xlu0 %456
          %458 = vadd.xlane.f32.xlu0 %v431
          %v459 = vpop.xlane.xlu0 %458
          %460 = vadd.xlane.f32.xlu0 %v432
          %v461 = vpop.xlane.xlu0 %460
          %462 = vadd.xlane.f32.xlu0 %v433
          %v463 = vpop.xlane.xlu0 %462
          %464 = vadd.xlane.f32.xlu0 %v434
          %v465 = vpop.xlane.xlu0 %464
          %466 = vadd.xlane.f32.xlu0 %v435
          %v467 = vpop.xlane.xlu0 %466
          %v468 = vrsqrt.pop %v389
          %v469 = vmul.f32 %v389, %v468
          %vm470 = vcmp.eq.f32.partialorder %v389, inf
          %v471 = vsel %vm470, %v389, %v469
          %vm472 = vcmp.eq.f32.partialorder %v389, 0.0
          %v473 = vand.u32 %v389, 2147483648
          %v474 = vsel %vm472, %v473, %v471
          %v475 = vrsqrt.pop %v391
          %v476 = vmul.f32 %v391, %v475
          %vm477 = vcmp.eq.f32.partialorder %v391, inf
          %v478 = vsel %vm477, %v391, %v476
          %vm479 = vcmp.eq.f32.partialorder %v391, 0.0
          %v480 = vand.u32 %v391, 2147483648
          %v481 = vsel %vm479, %v480, %v478
          %v482 = vrsqrt.pop %v393
          %v483 = vmul.f32 %v393, %v482
          %vm484 = vcmp.eq.f32.partialorder %v393, inf
          %v485 = vsel %vm484, %v393, %v483
          %vm486 = vcmp.eq.f32.partialorder %v393, 0.0
          %v487 = vand.u32 %v393, 2147483648
          %v488 = vsel %vm486, %v487, %v485
          %v489 = vrsqrt.pop %v395
          %v490 = vmul.f32 %v395, %v489
          %vm491 = vcmp.eq.f32.partialorder %v395, inf
          %v492 = vsel %vm491, %v395, %v490
          %vm493 = vcmp.eq.f32.partialorder %v395, 0.0
          %v494 = vand.u32 %v395, 2147483648
          %v495 = vsel %vm493, %v494, %v492
          %v496 = vrsqrt.pop %v397
          %v497 = vmul.f32 %v397, %v496
          %vm498 = vcmp.eq.f32.partialorder %v397, inf
          %v499 = vsel %vm498, %v397, %v497
          %vm500 = vcmp.eq.f32.partialorder %v397, 0.0
          %v501 = vand.u32 %v397, 2147483648
          %v502 = vsel %vm500, %v501, %v499
          %v503 = vrsqrt.pop %v399
          %v504 = vmul.f32 %v399, %v503
          %vm505 = vcmp.eq.f32.partialorder %v399, inf
          %v506 = vsel %vm505, %v399, %v504
          %vm507 = vcmp.eq.f32.partialorder %v399, 0.0
          %v508 = vand.u32 %v399, 2147483648
          %v509 = vsel %vm507, %v508, %v506
          %v510 = vrsqrt.pop %v401
          %v511 = vmul.f32 %v401, %v510
          %vm512 = vcmp.eq.f32.partialorder %v401, inf
          %v513 = vsel %vm512, %v401, %v511
          %vm514 = vcmp.eq.f32.partialorder %v401, 0.0
          %v515 = vand.u32 %v401, 2147483648
          %v516 = vsel %vm514, %v515, %v513
          %v517 = vrsqrt.pop %v403
          %v518 = vmul.f32 %v403, %v517
          %vm519 = vcmp.eq.f32.partialorder %v403, inf
          %v520 = vsel %vm519, %v403, %v518
          %vm521 = vcmp.eq.f32.partialorder %v403, 0.0
          %v522 = vand.u32 %v403, 2147483648
          %v523 = vsel %vm521, %v522, %v520
          %v524 = vrsqrt.pop %v405
          %v525 = vmul.f32 %v405, %v524
          %vm526 = vcmp.eq.f32.partialorder %v405, inf
          %v527 = vsel %vm526, %v405, %v525
          %vm528 = vcmp.eq.f32.partialorder %v405, 0.0
          %v529 = vand.u32 %v405, 2147483648
          %v530 = vsel %vm528, %v529, %v527
          %v531 = vrsqrt.pop %v407
          %v532 = vmul.f32 %v407, %v531
          %vm533 = vcmp.eq.f32.partialorder %v407, inf
          %v534 = vsel %vm533, %v407, %v532
          %vm535 = vcmp.eq.f32.partialorder %v407, 0.0
          %v536 = vand.u32 %v407, 2147483648
          %v537 = vsel %vm535, %v536, %v534
          %v538 = vrsqrt.pop %v409
          %v539 = vmul.f32 %v409, %v538
          %vm540 = vcmp.eq.f32.partialorder %v409, inf
          %v541 = vsel %vm540, %v409, %v539
          %vm542 = vcmp.eq.f32.partialorder %v409, 0.0
          %v543 = vand.u32 %v409, 2147483648
          %v544 = vsel %vm542, %v543, %v541
          %v545 = vrsqrt.pop %v411
          %v546 = vmul.f32 %v411, %v545
          %vm547 = vcmp.eq.f32.partialorder %v411, inf
          %v548 = vsel %vm547, %v411, %v546
          %vm549 = vcmp.eq.f32.partialorder %v411, 0.0
          %v550 = vand.u32 %v411, 2147483648
          %v551 = vsel %vm549, %v550, %v548
          %v552 = vrsqrt.pop %v413
          %v553 = vmul.f32 %v413, %v552
          %vm554 = vcmp.eq.f32.partialorder %v413, inf
          %v555 = vsel %vm554, %v413, %v553
          %vm556 = vcmp.eq.f32.partialorder %v413, 0.0
          %v557 = vand.u32 %v413, 2147483648
          %v558 = vsel %vm556, %v557, %v555
          %v559 = vrsqrt.pop %v415
          %v560 = vmul.f32 %v415, %v559
          %vm561 = vcmp.eq.f32.partialorder %v415, inf
          %v562 = vsel %vm561, %v415, %v560
          %vm563 = vcmp.eq.f32.partialorder %v415, 0.0
          %v564 = vand.u32 %v415, 2147483648
          %v565 = vsel %vm563, %v564, %v562
          %v566 = vrsqrt.pop %v417
          %v567 = vmul.f32 %v417, %v566
          %vm568 = vcmp.eq.f32.partialorder %v417, inf
          %v569 = vsel %vm568, %v417, %v567
          %vm570 = vcmp.eq.f32.partialorder %v417, 0.0
          %v571 = vand.u32 %v417, 2147483648
          %v572 = vsel %vm570, %v571, %v569
          %v573 = vrsqrt.pop %v419
          %v574 = vmul.f32 %v419, %v573
          %vm575 = vcmp.eq.f32.partialorder %v419, inf
          %v576 = vsel %vm575, %v419, %v574
          %vm577 = vcmp.eq.f32.partialorder %v419, 0.0
          %v578 = vand.u32 %v419, 2147483648
          %v579 = vsel %vm577, %v578, %v576
          %vm580 = vcmask 7168
          %581 = vst.msk [vmem:[#allocation2] sm:$0xff] %vm580, %v474
          %582 = vst.msk [vmem:[#allocation2 + $0x8] sm:$0xff] %vm580, %v481
          %583 = vst.msk [vmem:[#allocation2 + $0x10] sm:$0xff] %vm580, %v488
          %584 = vst.msk [vmem:[#allocation2 + $0x18] sm:$0xff] %vm580, %v495
          %585 = vst.msk [vmem:[#allocation2 + $0x20] sm:$0xff] %vm580, %v502
          %586 = vst.msk [vmem:[#allocation2 + $0x28] sm:$0xff] %vm580, %v509
          %587 = vst.msk [vmem:[#allocation2 + $0x30] sm:$0xff] %vm580, %v516
          %588 = vst.msk [vmem:[#allocation2 + $0x38] sm:$0xff] %vm580, %v523
          %589 = vst.msk [vmem:[#allocation2 + $0x40] sm:$0xff] %vm580, %v530
          %590 = vst.msk [vmem:[#allocation2 + $0x48] sm:$0xff] %vm580, %v537
          %591 = vst.msk [vmem:[#allocation2 + $0x50] sm:$0xff] %vm580, %v544
          %592 = vst.msk [vmem:[#allocation2 + $0x58] sm:$0xff] %vm580, %v551
          %593 = vst.msk [vmem:[#allocation2 + $0x60] sm:$0xff] %vm580, %v558
          %594 = vst.msk [vmem:[#allocation2 + $0x68] sm:$0xff] %vm580, %v565
          %595 = vst.msk [vmem:[#allocation2 + $0x70] sm:$0xff] %vm580, %v572
          %596 = vst.msk [vmem:[#allocation2 + $0x78] sm:$0xff] %vm580, %v579
          %v597 = vmul.f32 %v336, %v356
          %v598 = vmul.f32 %v337, %v357
          %v599 = vmul.f32 %v338, %v358
          %v600 = vmul.f32 %v339, %v359
          %v601 = vmul.f32 %v340, %v360
          %v602 = vmul.f32 %v341, %v361
          %v603 = vmul.f32 %v342, %v362
          %v604 = vmul.f32 %v343, %v363
          %v605 = vmul.f32 %v344, %v364
          %v606 = vmul.f32 %v345, %v365
          %v607 = vmul.f32 %v346, %v366
          %v608 = vmul.f32 %v347, %v367
          %v609 = vmul.f32 %v348, %v368
          %v610 = vmul.f32 %v349, %v369
          %v611 = vmul.f32 %v350, %v370
          %v612 = vmul.f32 %v351, %v371
          %613 = vadd.xlane.f32.xlu0 %v597
          %v614 = vpop.xlane.xlu0 %613
          %615 = vadd.xlane.f32.xlu0 %v598
          %v616 = vpop.xlane.xlu0 %615
          %617 = vadd.xlane.f32.xlu0 %v599
          %v618 = vpop.xlane.xlu0 %617
          %619 = vadd.xlane.f32.xlu0 %v600
          %v620 = vpop.xlane.xlu0 %619
          %621 = vadd.xlane.f32.xlu0 %v601
          %v622 = vpop.xlane.xlu0 %621
          %623 = vadd.xlane.f32.xlu0 %v602
          %v624 = vpop.xlane.xlu0 %623
          %625 = vadd.xlane.f32.xlu0 %v603
          %v626 = vpop.xlane.xlu0 %625
          %627 = vadd.xlane.f32.xlu0 %v604
          %v628 = vpop.xlane.xlu0 %627
          %629 = vadd.xlane.f32.xlu0 %v605
          %v630 = vpop.xlane.xlu0 %629
          %631 = vadd.xlane.f32.xlu0 %v606
          %v632 = vpop.xlane.xlu0 %631
          %633 = vadd.xlane.f32.xlu0 %v607
          %v634 = vpop.xlane.xlu0 %633
          %635 = vadd.xlane.f32.xlu0 %v608
          %v636 = vpop.xlane.xlu0 %635
          %637 = vadd.xlane.f32.xlu0 %v609
          %v638 = vpop.xlane.xlu0 %637
          %639 = vadd.xlane.f32.xlu0 %v610
          %v640 = vpop.xlane.xlu0 %639
          %641 = vadd.xlane.f32.xlu0 %v611
          %v642 = vpop.xlane.xlu0 %641
          %643 = vadd.xlane.f32.xlu0 %v612
          %v644 = vpop.xlane.xlu0 %643
          %v645 = vrsqrt.pop %v437
          %v646 = vmul.f32 %v437, %v645
          %vm647 = vcmp.eq.f32.partialorder %v437, inf
          %v648 = vsel %vm647, %v437, %v646
          %vm649 = vcmp.eq.f32.partialorder %v437, 0.0
          %v650 = vand.u32 %v437, 2147483648
          %v651 = vsel %vm649, %v650, %v648
          %v652 = vrsqrt.pop %v439
          %v653 = vmul.f32 %v439, %v652
          %vm654 = vcmp.eq.f32.partialorder %v439, inf
          %v655 = vsel %vm654, %v439, %v653
          %vm656 = vcmp.eq.f32.partialorder %v439, 0.0
          %v657 = vand.u32 %v439, 2147483648
          %v658 = vsel %vm656, %v657, %v655
          %v659 = vrsqrt.pop %v441
          %v660 = vmul.f32 %v441, %v659
          %vm661 = vcmp.eq.f32.partialorder %v441, inf
          %v662 = vsel %vm661, %v441, %v660
          %vm663 = vcmp.eq.f32.partialorder %v441, 0.0
          %v664 = vand.u32 %v441, 2147483648
          %v665 = vsel %vm663, %v664, %v662
          %v666 = vrsqrt.pop %v443
          %v667 = vmul.f32 %v443, %v666
          %vm668 = vcmp.eq.f32.partialorder %v443, inf
          %v669 = vsel %vm668, %v443, %v667
          %vm670 = vcmp.eq.f32.partialorder %v443, 0.0
          %v671 = vand.u32 %v443, 2147483648
          %v672 = vsel %vm670, %v671, %v669
          %v673 = vrsqrt.pop %v445
          %v674 = vmul.f32 %v445, %v673
          %vm675 = vcmp.eq.f32.partialorder %v445, inf
          %v676 = vsel %vm675, %v445, %v674
          %vm677 = vcmp.eq.f32.partialorder %v445, 0.0
          %v678 = vand.u32 %v445, 2147483648
          %v679 = vsel %vm677, %v678, %v676
          %v680 = vrsqrt.pop %v447
          %v681 = vmul.f32 %v447, %v680
          %vm682 = vcmp.eq.f32.partialorder %v447, inf
          %v683 = vsel %vm682, %v447, %v681
          %vm684 = vcmp.eq.f32.partialorder %v447, 0.0
          %v685 = vand.u32 %v447, 2147483648
          %v686 = vsel %vm684, %v685, %v683
          %v687 = vrsqrt.pop %v449
          %v688 = vmul.f32 %v449, %v687
          %vm689 = vcmp.eq.f32.partialorder %v449, inf
          %v690 = vsel %vm689, %v449, %v688
          %vm691 = vcmp.eq.f32.partialorder %v449, 0.0
          %v692 = vand.u32 %v449, 2147483648
          %v693 = vsel %vm691, %v692, %v690
          %v694 = vrsqrt.pop %v451
          %v695 = vmul.f32 %v451, %v694
          %vm696 = vcmp.eq.f32.partialorder %v451, inf
          %v697 = vsel %vm696, %v451, %v695
          %vm698 = vcmp.eq.f32.partialorder %v451, 0.0
          %v699 = vand.u32 %v451, 2147483648
          %v700 = vsel %vm698, %v699, %v697
          %v701 = vrsqrt.pop %v453
          %v702 = vmul.f32 %v453, %v701
          %vm703 = vcmp.eq.f32.partialorder %v453, inf
          %v704 = vsel %vm703, %v453, %v702
          %vm705 = vcmp.eq.f32.partialorder %v453, 0.0
          %v706 = vand.u32 %v453, 2147483648
          %v707 = vsel %vm705, %v706, %v704
          %v708 = vrsqrt.pop %v455
          %v709 = vmul.f32 %v455, %v708
          %vm710 = vcmp.eq.f32.partialorder %v455, inf
          %v711 = vsel %vm710, %v455, %v709
          %vm712 = vcmp.eq.f32.partialorder %v455, 0.0
          %v713 = vand.u32 %v455, 2147483648
          %v714 = vsel %vm712, %v713, %v711
          %v715 = vrsqrt.pop %v457
          %v716 = vmul.f32 %v457, %v715
          %vm717 = vcmp.eq.f32.partialorder %v457, inf
          %v718 = vsel %vm717, %v457, %v716
          %vm719 = vcmp.eq.f32.partialorder %v457, 0.0
          %v720 = vand.u32 %v457, 2147483648
          %v721 = vsel %vm719, %v720, %v718
          %v722 = vrsqrt.pop %v459
          %v723 = vmul.f32 %v459, %v722
          %vm724 = vcmp.eq.f32.partialorder %v459, inf
          %v725 = vsel %vm724, %v459, %v723
          %vm726 = vcmp.eq.f32.partialorder %v459, 0.0
          %v727 = vand.u32 %v459, 2147483648
          %v728 = vsel %vm726, %v727, %v725
          %v729 = vrsqrt.pop %v461
          %v730 = vmul.f32 %v461, %v729
          %vm731 = vcmp.eq.f32.partialorder %v461, inf
          %v732 = vsel %vm731, %v461, %v730
          %vm733 = vcmp.eq.f32.partialorder %v461, 0.0
          %v734 = vand.u32 %v461, 2147483648
          %v735 = vsel %vm733, %v734, %v732
          %v736 = vrsqrt.pop %v463
          %v737 = vmul.f32 %v463, %v736
          %vm738 = vcmp.eq.f32.partialorder %v463, inf
          %v739 = vsel %vm738, %v463, %v737
          %vm740 = vcmp.eq.f32.partialorder %v463, 0.0
          %v741 = vand.u32 %v463, 2147483648
          %v742 = vsel %vm740, %v741, %v739
          %v743 = vrsqrt.pop %v465
          %v744 = vmul.f32 %v465, %v743
          %vm745 = vcmp.eq.f32.partialorder %v465, inf
          %v746 = vsel %vm745, %v465, %v744
          %vm747 = vcmp.eq.f32.partialorder %v465, 0.0
          %v748 = vand.u32 %v465, 2147483648
          %v749 = vsel %vm747, %v748, %v746
          %v750 = vrsqrt.pop %v467
          %v751 = vmul.f32 %v467, %v750
          %vm752 = vcmp.eq.f32.partialorder %v467, inf
          %v753 = vsel %vm752, %v467, %v751
          %vm754 = vcmp.eq.f32.partialorder %v467, 0.0
          %v755 = vand.u32 %v467, 2147483648
          %v756 = vsel %vm754, %v755, %v753
          %v757 = vmul.f32 %v474, %v651
          %v758 = vmul.f32 %v481, %v658
          %v759 = vmul.f32 %v488, %v665
          %v760 = vmul.f32 %v495, %v672
          %v761 = vmul.f32 %v502, %v679
          %v762 = vmul.f32 %v509, %v686
          %v763 = vmul.f32 %v516, %v693
          %v764 = vmul.f32 %v523, %v700
          %v765 = vmul.f32 %v530, %v707
          %v766 = vmul.f32 %v537, %v714
          %v767 = vmul.f32 %v544, %v721
          %v768 = vmul.f32 %v551, %v728
          %v769 = vmul.f32 %v558, %v735
          %v770 = vmul.f32 %v565, %v742
          %v771 = vmul.f32 %v572, %v749
          %v772 = vmul.f32 %v579, %v756
          %v773 = vrcp.pop %v757
          %v774 = vmul.f32 %v614, %v773
          %v775 = vrcp.pop %v758
          %v776 = vmul.f32 %v616, %v775
          %v777 = vrcp.pop %v759
          %v778 = vmul.f32 %v618, %v777
          %v779 = vrcp.pop %v760
          %v780 = vmul.f32 %v620, %v779
          %v781 = vrcp.pop %v761
          %v782 = vmul.f32 %v622, %v781
          %v783 = vrcp.pop %v762
          %v784 = vmul.f32 %v624, %v783
          %v785 = vrcp.pop %v763
          %v786 = vmul.f32 %v626, %v785
          %v787 = vrcp.pop %v764
          %v788 = vmul.f32 %v628, %v787
          %v789 = vrcp.pop %v765
          %v790 = vmul.f32 %v630, %v789
          %v791 = vrcp.pop %v766
          %v792 = vmul.f32 %v632, %v791
          %v793 = vrcp.pop %v767
          %v794 = vmul.f32 %v634, %v793
          %v795 = vrcp.pop %v768
          %v796 = vmul.f32 %v636, %v795
          %v797 = vrcp.pop %v769
          %v798 = vmul.f32 %v638, %v797
          %v799 = vrcp.pop %v770
          %v800 = vmul.f32 %v640, %v799
          %v801 = vrcp.pop %v771
          %v802 = vmul.f32 %v642, %v801
          %v803 = vrcp.pop %v772
          %v804 = vmul.f32 %v644, %v803
          %805 = vst.msk [vmem:[#allocation3] sm:$0xff] %vm580, %v774
          %806 = vst.msk [vmem:[#allocation3 + $0x8] sm:$0xff] %vm580, %v776
          %807 = vst.msk [vmem:[#allocation3 + $0x10] sm:$0xff] %vm580, %v778
          %808 = vst.msk [vmem:[#allocation3 + $0x18] sm:$0xff] %vm580, %v780
          %809 = vst.msk [vmem:[#allocation3 + $0x20] sm:$0xff] %vm580, %v782
          %810 = vst.msk [vmem:[#allocation3 + $0x28] sm:$0xff] %vm580, %v784
          %811 = vst.msk [vmem:[#allocation3 + $0x30] sm:$0xff] %vm580, %v786
          %812 = vst.msk [vmem:[#allocation3 + $0x38] sm:$0xff] %vm580, %v788
          %813 = vst.msk [vmem:[#allocation3 + $0x40] sm:$0xff] %vm580, %v790
          %814 = vst.msk [vmem:[#allocation3 + $0x48] sm:$0xff] %vm580, %v792
          %815 = vst.msk [vmem:[#allocation3 + $0x50] sm:$0xff] %vm580, %v794
          %816 = vst.msk [vmem:[#allocation3 + $0x58] sm:$0xff] %vm580, %v796
          %817 = vst.msk [vmem:[#allocation3 + $0x60] sm:$0xff] %vm580, %v798
          %818 = vst.msk [vmem:[#allocation3 + $0x68] sm:$0xff] %vm580, %v800
          %819 = vst.msk [vmem:[#allocation3 + $0x70] sm:$0xff] %vm580, %v802
          %820 = vst.msk [vmem:[#allocation3 + $0x78] sm:$0xff] %vm580, %v804
          %821 = vst.msk [vmem:[#allocation4] sm:$0xff] %vm580, 0.0
          %822 = vst.msk [vmem:[#allocation4 + $0x8] sm:$0xff] %vm580, 0.0
          %823 = vst.msk [vmem:[#allocation4 + $0x10] sm:$0xff] %vm580, 0.0
          %824 = vst.msk [vmem:[#allocation4 + $0x18] sm:$0xff] %vm580, 0.0
          %825 = vst.msk [vmem:[#allocation4 + $0x20] sm:$0xff] %vm580, 0.0
          %826 = vst.msk [vmem:[#allocation4 + $0x28] sm:$0xff] %vm580, 0.0
          %827 = vst.msk [vmem:[#allocation4 + $0x30] sm:$0xff] %vm580, 0.0
          %828 = vst.msk [vmem:[#allocation4 + $0x38] sm:$0xff] %vm580, 0.0
          %829 = vst.msk [vmem:[#allocation4 + $0x40] sm:$0xff] %vm580, 0.0
          %830 = vst.msk [vmem:[#allocation4 + $0x48] sm:$0xff] %vm580, 0.0
          %831 = vst.msk [vmem:[#allocation4 + $0x50] sm:$0xff] %vm580, 0.0
          %832 = vst.msk [vmem:[#allocation4 + $0x58] sm:$0xff] %vm580, 0.0
          %833 = vst.msk [vmem:[#allocation4 + $0x60] sm:$0xff] %vm580, 0.0
          %834 = vst.msk [vmem:[#allocation4 + $0x68] sm:$0xff] %vm580, 0.0
          %835 = vst.msk [vmem:[#allocation4 + $0x70] sm:$0xff] %vm580, 0.0
          %836 = vst.msk [vmem:[#allocation4 + $0x78] sm:$0xff] %vm580, 0.0
        $region48: #{tpu_custom_call.1} parent=31 // pred_fallthru
          _
        %v837 = vld [vmem:[%s281] sm:$0xff]
        %v838 = vld [vmem:[%s281 + $0x8] sm:$0xff]
        %v839 = vld [vmem:[%s281 + $0x10] sm:$0xff]
        %v840 = vld [vmem:[%s281 + $0x18] sm:$0xff]
        %v841 = vld [vmem:[%s281 + $0x20] sm:$0xff]
        %v842 = vld [vmem:[%s281 + $0x28] sm:$0xff]
        %v843 = vld [vmem:[%s281 + $0x30] sm:$0xff]
        %v844 = vld [vmem:[%s281 + $0x38] sm:$0xff]
        %v845 = vld [vmem:[%s281 + $0x40] sm:$0xff]
        %v846 = vld [vmem:[%s281 + $0x48] sm:$0xff]
        %v847 = vld [vmem:[%s281 + $0x50] sm:$0xff]
        %v848 = vld [vmem:[%s281 + $0x58] sm:$0xff]
        %v849 = vld [vmem:[%s281 + $0x60] sm:$0xff]
        %v850 = vld [vmem:[%s281 + $0x68] sm:$0xff]
        %v851 = vld [vmem:[%s281 + $0x70] sm:$0xff]
        %v852 = vld [vmem:[%s281 + $0x78] sm:$0xff]
        %853 = vmatprep.subr.mxu0 0.0
        %854 = vmatpush1.xpose.msra.mxu0 %v837
        %855 = vmatprep.subr.mxu0 0.0
        %856 = vmatpush1.xpose.msra.mxu0 %v838
        %857 = vmatprep.subr.mxu0 0.0
        %858 = vmatpush1.xpose.msra.mxu0 %v839
        %859 = vmatprep.subr.mxu0 0.0
        %860 = vmatpush1.xpose.msra.mxu0 %v840
        %861 = vmatprep.subr.mxu0 0.0
        %862 = vmatpush1.xpose.msra.mxu0 %v841
        %863 = vmatprep.subr.mxu0 0.0
        %864 = vmatpush1.xpose.msra.mxu0 %v842
        %865 = vmatprep.subr.mxu0 0.0
        %866 = vmatpush1.xpose.msra.mxu0 %v843
        %867 = vmatprep.subr.mxu0 0.0
        %868 = vmatpush1.xpose.msra.mxu0 %v844
        %869 = vmatprep.subr.mxu0 0.0
        %870 = vmatpush1.xpose.msra.mxu0 %v845
        %871 = vmatprep.subr.mxu0 0.0
        %872 = vmatpush1.xpose.msra.mxu0 %v846
        %873 = vmatprep.subr.mxu0 0.0
        %874 = vmatpush1.xpose.msra.mxu0 %v847
        %875 = vmatprep.subr.mxu0 0.0
        %876 = vmatpush1.xpose.msra.mxu0 %v848
        %877 = vmatprep.subr.mxu0 0.0
        %878 = vmatpush1.xpose.msra.mxu0 %v849
        %879 = vmatprep.subr.mxu0 0.0
        %880 = vmatpush1.xpose.msra.mxu0 %v850
        %881 = vmatprep.subr.mxu0 0.0
        %882 = vmatpush1.xpose.msra.mxu0 %v851
        %883 = vmatprep.subr.mxu0 0.0
        %884 = vmatpush1.xpose.msra.mxu0 %v852
        %885 = vmatprep.subr.mxu0 0.0
        %886 = vmatpush1.xpose.msra.mxu0 0.0
        %887 = vmatprep.subr.mxu0 0.0
        %888 = vmatpush1.xpose.msra.mxu0 0.0
        %889 = vmatprep.subr.mxu0 0.0
        %890 = vmatpush1.xpose.msra.mxu0 0.0
        %891 = vmatprep.subr.mxu0 0.0
        %892 = vmatpush1.xpose.msra.mxu0 0.0
        %893 = vmatprep.subr.mxu0 0.0
        %894 = vmatpush1.xpose.msra.mxu0 0.0
        %895 = vmatprep.subr.mxu0 0.0
        %896 = vmatpush1.xpose.msra.mxu0 0.0
        %897 = vmatprep.subr.mxu0 0.0
        %898 = vmatpush1.xpose.msra.mxu0 0.0
        %899 = vmatprep.subr.mxu0 0.0
        %900 = vmatpush1.xpose.msra.mxu0 0.0
        %901 = vmatprep.subr.mxu0 0.0
        %902 = vmatpush1.xpose.msra.mxu0 0.0
        %903 = vmatprep.subr.mxu0 0.0
        %904 = vmatpush1.xpose.msra.mxu0 0.0
        %905 = vmatprep.subr.mxu0 0.0
        %906 = vmatpush1.xpose.msra.mxu0 0.0
        %907 = vmatprep.subr.mxu0 0.0
        %908 = vmatpush1.xpose.msra.mxu0 0.0
        %909 = vmatprep.subr.mxu0 0.0
        %910 = vmatpush1.xpose.msra.mxu0 0.0
        %911 = vmatprep.subr.mxu0 0.0
        %912 = vmatpush1.xpose.msra.mxu0 0.0
        %913 = vmatprep.subr.mxu0 0.0
        %914 = vmatpush1.xpose.msra.mxu0 0.0
        %915 = vmatprep.subr.mxu0 0.0
        %916 = vmatpush1.xpose.msra.mxu0 0.0
        %917 = vmatprep.mubr.f32.mxu0 0.0
        %918 = vmatmul.mubr.f32.gmra.mrb[0].mxu0 %v336
        %v919 = vpop.f32.mrb[0].mxu0
        %v920 = vadd.f32 0.0, %v919
        %v921 = vpop.f32.mrb[0].mxu0
        %922 = vmatprep.mubr.f32.mxu0 0.0
        %923 = vmatmul.mubr.f32.gmra.mrb[0].mxu0 %v337
        %v924 = vpop.f32.mrb[0].mxu0
        %v925 = vadd.f32 0.0, %v924
        %v926 = vpop.f32.mrb[0].mxu0
        %927 = vmatprep.mubr.f32.mxu0 0.0
        %928 = vmatmul.mubr.f32.gmra.mrb[0].mxu0 %v338
        %v929 = vpop.f32.mrb[0].mxu0
        %v930 = vadd.f32 0.0, %v929
        %v931 = vpop.f32.mrb[0].mxu0
        %932 = vmatprep.mubr.f32.mxu0 0.0
        %933 = vmatmul.mubr.f32.gmra.mrb[0].mxu0 %v339
        %v934 = vpop.f32.mrb[0].mxu0
        %v935 = vadd.f32 0.0, %v934
        %v936 = vpop.f32.mrb[0].mxu0
        %937 = vmatprep.mubr.f32.mxu0 0.0
        %938 = vmatmul.mubr.f32.gmra.mrb[0].mxu0 %v340
        %v939 = vpop.f32.mrb[0].mxu0
        %v940 = vadd.f32 0.0, %v939
        %v941 = vpop.f32.mrb[0].mxu0
        %942 = vmatprep.mubr.f32.mxu0 0.0
        %943 = vmatmul.mubr.f32.gmra.mrb[0].mxu0 %v341
        %v944 = vpop.f32.mrb[0].mxu0
        %v945 = vadd.f32 0.0, %v944
        %v946 = vpop.f32.mrb[0].mxu0
        %947 = vmatprep.mubr.f32.mxu0 0.0
        %948 = vmatmul.mubr.f32.gmra.mrb[0].mxu0 %v342
        %v949 = vpop.f32.mrb[0].mxu0
        %v950 = vadd.f32 0.0, %v949
        %v951 = vpop.f32.mrb[0].mxu0
        %952 = vmatprep.mubr.f32.mxu0 0.0
        %953 = vmatmul.mubr.f32.gmra.mrb[0].mxu0 %v343
        %v954 = vpop.f32.mrb[0].mxu0
        %v955 = vadd.f32 0.0, %v954
        %v956 = vpop.f32.mrb[0].mxu0
        %957 = vmatprep.mubr.f32.mxu0 0.0
        %958 = vmatmul.mubr.f32.gmra.mrb[0].mxu0 %v344
        %v959 = vpop.f32.mrb[0].mxu0
        %v960 = vadd.f32 0.0, %v959
        %v961 = vpop.f32.mrb[0].mxu0
        %962 = vmatprep.mubr.f32.mxu0 0.0
        %963 = vmatmul.mubr.f32.gmra.mrb[0].mxu0 %v345
        %v964 = vpop.f32.mrb[0].mxu0
        %v965 = vadd.f32 0.0, %v964
        %v966 = vpop.f32.mrb[0].mxu0
        %967 = vmatprep.mubr.f32.mxu0 0.0
        %968 = vmatmul.mubr.f32.gmra.mrb[0].mxu0 %v346
        %v969 = vpop.f32.mrb[0].mxu0
        %v970 = vadd.f32 0.0, %v969
        %v971 = vpop.f32.mrb[0].mxu0
        %972 = vmatprep.mubr.f32.mxu0 0.0
        %973 = vmatmul.mubr.f32.gmra.mrb[0].mxu0 %v347
        %v974 = vpop.f32.mrb[0].mxu0
        %v975 = vadd.f32 0.0, %v974
        %v976 = vpop.f32.mrb[0].mxu0
        %977 = vmatprep.mubr.f32.mxu0 0.0
        %978 = vmatmul.mubr.f32.gmra.mrb[0].mxu0 %v348
        %v979 = vpop.f32.mrb[0].mxu0
        %v980 = vadd.f32 0.0, %v979
        %v981 = vpop.f32.mrb[0].mxu0
        %982 = vmatprep.mubr.f32.mxu0 0.0
        %983 = vmatmul.mubr.f32.gmra.mrb[0].mxu0 %v349
        %v984 = vpop.f32.mrb[0].mxu0
        %v985 = vadd.f32 0.0, %v984
        %v986 = vpop.f32.mrb[0].mxu0
        %987 = vmatprep.mubr.f32.mxu0 0.0
        %988 = vmatmul.mubr.f32.gmra.mrb[0].mxu0 %v350
        %v989 = vpop.f32.mrb[0].mxu0
        %v990 = vadd.f32 0.0, %v989
        %v991 = vpop.f32.mrb[0].mxu0
        %992 = vmatprep.mubr.f32.mxu0 0.0
        %993 = vmatmul.mubr.f32.gmra.mrb[0].mxu0 %v351
        %v994 = vpop.f32.mrb[0].mxu0
        %v995 = vadd.f32 0.0, %v994
        %v996 = vpop.f32.mrb[0].mxu0
        %997 = vdwg.mxu0
        %v998 = vmul.f32 %v837, %v837
        %v999 = vmul.f32 %v838, %v838
        %v1000 = vmul.f32 %v839, %v839
        %v1001 = vmul.f32 %v840, %v840
        %v1002 = vmul.f32 %v841, %v841
        %v1003 = vmul.f32 %v842, %v842
        %v1004 = vmul.f32 %v843, %v843
        %v1005 = vmul.f32 %v844, %v844
        %v1006 = vmul.f32 %v845, %v845
        %v1007 = vmul.f32 %v846, %v846
        %v1008 = vmul.f32 %v847, %v847
        %v1009 = vmul.f32 %v848, %v848
        %v1010 = vmul.f32 %v849, %v849
        %v1011 = vmul.f32 %v850, %v850
        %v1012 = vmul.f32 %v851, %v851
        %v1013 = vmul.f32 %v852, %v852
        %1014 = vmatprep.subr.mxu0 0.0
        %1015 = vmatpush1.xpose.msra.mxu0 %v998
        %1016 = vmatprep.subr.mxu0 0.0
        %1017 = vmatpush1.xpose.msra.mxu0 %v999
        %1018 = vmatprep.subr.mxu0 0.0
        %1019 = vmatpush1.xpose.msra.mxu0 %v1000
        %1020 = vmatprep.subr.mxu0 0.0
        %1021 = vmatpush1.xpose.msra.mxu0 %v1001
        %1022 = vmatprep.subr.mxu0 0.0
        %1023 = vmatpush1.xpose.msra.mxu0 %v1002
        %1024 = vmatprep.subr.mxu0 0.0
        %1025 = vmatpush1.xpose.msra.mxu0 %v1003
        %1026 = vmatprep.subr.mxu0 0.0
        %1027 = vmatpush1.xpose.msra.mxu0 %v1004
        %1028 = vmatprep.subr.mxu0 0.0
        %1029 = vmatpush1.xpose.msra.mxu0 %v1005
        %1030 = vmatprep.subr.mxu0 0.0
        %1031 = vmatpush1.xpose.msra.mxu0 %v1006
        %1032 = vmatprep.subr.mxu0 0.0
        %1033 = vmatpush1.xpose.msra.mxu0 %v1007
        %1034 = vmatprep.subr.mxu0 0.0
        %1035 = vmatpush1.xpose.msra.mxu0 %v1008
        %1036 = vmatprep.subr.mxu0 0.0
        %1037 = vmatpush1.xpose.msra.mxu0 %v1009
        %1038 = vmatprep.subr.mxu0 0.0
        %1039 = vmatpush1.xpose.msra.mxu0 %v1010
        %1040 = vmatprep.subr.mxu0 0.0
        %1041 = vmatpush1.xpose.msra.mxu0 %v1011
        %1042 = vmatprep.subr.mxu0 0.0
        %1043 = vmatpush1.xpose.msra.mxu0 %v1012
        %1044 = vmatprep.subr.mxu0 0.0
        %1045 = vmatpush1.xpose.msra.mxu0 %v1013
        %1046 = vmatprep.subr.mxu0 0.0
        %1047 = vmatpush1.xpose.msra.mxu0 0.0
        %1048 = vmatprep.subr.mxu0 0.0
        %1049 = vmatpush1.xpose.msra.mxu0 0.0
        %1050 = vmatprep.subr.mxu0 0.0
        %1051 = vmatpush1.xpose.msra.mxu0 0.0
        %1052 = vmatprep.subr.mxu0 0.0
        %1053 = vmatpush1.xpose.msra.mxu0 0.0
        %1054 = vmatprep.subr.mxu0 0.0
        %1055 = vmatpush1.xpose.msra.mxu0 0.0
        %1056 = vmatprep.subr.mxu0 0.0
        %1057 = vmatpush1.xpose.msra.mxu0 0.0
        %1058 = vmatprep.subr.mxu0 0.0
        %1059 = vmatpush1.xpose.msra.mxu0 0.0
        %1060 = vmatprep.subr.mxu0 0.0
        %1061 = vmatpush1.xpose.msra.mxu0 0.0
        %1062 = vmatprep.subr.mxu0 0.0
        %1063 = vmatpush1.xpose.msra.mxu0 0.0
        %1064 = vmatprep.subr.mxu0 0.0
        %1065 = vmatpush1.xpose.msra.mxu0 0.0
        %1066 = vmatprep.subr.mxu0 0.0
        %1067 = vmatpush1.xpose.msra.mxu0 0.0
        %1068 = vmatprep.subr.mxu0 0.0
        %1069 = vmatpush1.xpose.msra.mxu0 0.0
        %1070 = vmatprep.subr.mxu0 0.0
        %1071 = vmatpush1.xpose.msra.mxu0 0.0
        %1072 = vmatprep.subr.mxu0 0.0
        %1073 = vmatpush1.xpose.msra.mxu0 0.0
        %1074 = vmatprep.subr.mxu0 0.0
        %1075 = vmatpush1.xpose.msra.mxu0 0.0
        %1076 = vmatprep.subr.mxu0 0.0
        %1077 = vmatpush1.xpose.msra.mxu0 0.0
        %1078 = vmatprep.mubr.f32.mxu0 0.0
        %1079 = vmatmul.mubr.f32.gmra.mrb[0].mxu0 1.0
        %v1080 = vpop.f32.mrb[0].mxu0
        %v1081 = vadd.f32 0.0, %v1080
        %v1082 = vpop.f32.mrb[0].mxu0
        %1083 = vdwg.mxu0
        %v1084 = vrsqrt.pop %v1081
        %v1085 = vmul.f32 %v1081, %v1084
        %vm1086 = vcmp.eq.f32.partialorder %v1081, inf
        %v1087 = vsel %vm1086, %v1081, %v1085
        %vm1088 = vcmp.eq.f32.partialorder %v1081, 0.0
        %v1089 = vand.u32 %v1081, 2147483648
        %v1090 = vsel %vm1088, %v1089, %v1087
        %v1091 = vld [vmem:[#allocation2] sm:$0xff]
        %v1092 = vld [vmem:[#allocation2 + $0x8] sm:$0xff]
        %v1093 = vld [vmem:[#allocation2 + $0x10] sm:$0xff]
        %v1094 = vld [vmem:[#allocation2 + $0x18] sm:$0xff]
        %v1095 = vld [vmem:[#allocation2 + $0x20] sm:$0xff]
        %v1096 = vld [vmem:[#allocation2 + $0x28] sm:$0xff]
        %v1097 = vld [vmem:[#allocation2 + $0x30] sm:$0xff]
        %v1098 = vld [vmem:[#allocation2 + $0x38] sm:$0xff]
        %v1099 = vld [vmem:[#allocation2 + $0x40] sm:$0xff]
        %v1100 = vld [vmem:[#allocation2 + $0x48] sm:$0xff]
        %v1101 = vld [vmem:[#allocation2 + $0x50] sm:$0xff]
        %v1102 = vld [vmem:[#allocation2 + $0x58] sm:$0xff]
        %v1103 = vld [vmem:[#allocation2 + $0x60] sm:$0xff]
        %v1104 = vld [vmem:[#allocation2 + $0x68] sm:$0xff]
        %v1105 = vld [vmem:[#allocation2 + $0x70] sm:$0xff]
        %v1106 = vld [vmem:[#allocation2 + $0x78] sm:$0xff]
        %1108 = vset.pattern.permute.xlu0 0
        %1109 = vperm.xlu0 %1108, %v1091
        %v1110 = vpop.permute.xlu0 %1109
        %1113 = vset.pattern.permute.xlu0 0
        %1114 = vperm.xlu0 %1113, %v1092
        %v1115 = vpop.permute.xlu0 %1114
        %1118 = vset.pattern.permute.xlu0 0
        %1119 = vperm.xlu0 %1118, %v1093
        %v1120 = vpop.permute.xlu0 %1119
        %1123 = vset.pattern.permute.xlu0 0
        %1124 = vperm.xlu0 %1123, %v1094
        %v1125 = vpop.permute.xlu0 %1124
        %1128 = vset.pattern.permute.xlu0 0
        %1129 = vperm.xlu0 %1128, %v1095
        %v1130 = vpop.permute.xlu0 %1129
        %1133 = vset.pattern.permute.xlu0 0
        %1134 = vperm.xlu0 %1133, %v1096
        %v1135 = vpop.permute.xlu0 %1134
        %1138 = vset.pattern.permute.xlu0 0
        %1139 = vperm.xlu0 %1138, %v1097
        %v1140 = vpop.permute.xlu0 %1139
        %1143 = vset.pattern.permute.xlu0 0
        %1144 = vperm.xlu0 %1143, %v1098
        %v1145 = vpop.permute.xlu0 %1144
        %1148 = vset.pattern.permute.xlu0 0
        %1149 = vperm.xlu0 %1148, %v1099
        %v1150 = vpop.permute.xlu0 %1149
        %1153 = vset.pattern.permute.xlu0 0
        %1154 = vperm.xlu0 %1153, %v1100
        %v1155 = vpop.permute.xlu0 %1154
        %1158 = vset.pattern.permute.xlu0 0
        %1159 = vperm.xlu0 %1158, %v1101
        %v1160 = vpop.permute.xlu0 %1159
        %1163 = vset.pattern.permute.xlu0 0
        %1164 = vperm.xlu0 %1163, %v1102
        %v1165 = vpop.permute.xlu0 %1164
        %1168 = vset.pattern.permute.xlu0 0
        %1169 = vperm.xlu0 %1168, %v1103
        %v1170 = vpop.permute.xlu0 %1169
        %1173 = vset.pattern.permute.xlu0 0
        %1174 = vperm.xlu0 %1173, %v1104
        %v1175 = vpop.permute.xlu0 %1174
        %1178 = vset.pattern.permute.xlu0 0
        %1179 = vperm.xlu0 %1178, %v1105
        %v1180 = vpop.permute.xlu0 %1179
        %1183 = vset.pattern.permute.xlu0 0
        %1184 = vperm.xlu0 %1183, %v1106
        %v1185 = vpop.permute.xlu0 %1184
        %v1187 = vlaneseq
        %v1188 = vshrl.u32 %v1187, 7
        %v1189 = vsub.s32 0, %v1188
        %v1190 = vrot.slane %v1090, %v1189
        %v1191 = vmul.f32 %v1110, %v1190
        %v1192 = vmul.f32 %v1115, %v1190
        %v1193 = vmul.f32 %v1120, %v1190
        %v1194 = vmul.f32 %v1125, %v1190
        %v1195 = vmul.f32 %v1130, %v1190
        %v1196 = vmul.f32 %v1135, %v1190
        %v1197 = vmul.f32 %v1140, %v1190
        %v1198 = vmul.f32 %v1145, %v1190
        %v1199 = vmul.f32 %v1150, %v1190
        %v1200 = vmul.f32 %v1155, %v1190
        %v1201 = vmul.f32 %v1160, %v1190
        %v1202 = vmul.f32 %v1165, %v1190
        %v1203 = vmul.f32 %v1170, %v1190
        %v1204 = vmul.f32 %v1175, %v1190
        %v1205 = vmul.f32 %v1180, %v1190
        %v1206 = vmul.f32 %v1185, %v1190
        %v1207 = vadd.f32 %v1191, 1e-06
        %v1208 = vadd.f32 %v1192, 1e-06
        %v1209 = vadd.f32 %v1193, 1e-06
        %v1210 = vadd.f32 %v1194, 1e-06
        %v1211 = vadd.f32 %v1195, 1e-06
        %v1212 = vadd.f32 %v1196, 1e-06
        %v1213 = vadd.f32 %v1197, 1e-06
        %v1214 = vadd.f32 %v1198, 1e-06
        %v1215 = vadd.f32 %v1199, 1e-06
        %v1216 = vadd.f32 %v1200, 1e-06
        %v1217 = vadd.f32 %v1201, 1e-06
        %v1218 = vadd.f32 %v1202, 1e-06
        %v1219 = vadd.f32 %v1203, 1e-06
        %v1220 = vadd.f32 %v1204, 1e-06
        %v1221 = vadd.f32 %v1205, 1e-06
        %v1222 = vadd.f32 %v1206, 1e-06
        %v1223 = vrcp.pop %v1207
        %v1224 = vrcp.pop %v1208
        %v1225 = vrcp.pop %v1209
        %v1226 = vrcp.pop %v1210
        %v1227 = vrcp.pop %v1211
        %v1228 = vrcp.pop %v1212
        %v1229 = vrcp.pop %v1213
        %v1230 = vrcp.pop %v1214
        %v1231 = vrcp.pop %v1215
        %v1232 = vrcp.pop %v1216
        %v1233 = vrcp.pop %v1217
        %v1234 = vrcp.pop %v1218
        %v1235 = vrcp.pop %v1219
        %v1236 = vrcp.pop %v1220
        %v1237 = vrcp.pop %v1221
        %v1238 = vrcp.pop %v1222
        %v1239 = vld [vmem:[#allocation4] sm:$0xff]
        %v1240 = vld [vmem:[#allocation4 + $0x8] sm:$0xff]
        %v1241 = vld [vmem:[#allocation4 + $0x10] sm:$0xff]
        %v1242 = vld [vmem:[#allocation4 + $0x18] sm:$0xff]
        %v1243 = vld [vmem:[#allocation4 + $0x20] sm:$0xff]
        %v1244 = vld [vmem:[#allocation4 + $0x28] sm:$0xff]
        %v1245 = vld [vmem:[#allocation4 + $0x30] sm:$0xff]
        %v1246 = vld [vmem:[#allocation4 + $0x38] sm:$0xff]
        %v1247 = vld [vmem:[#allocation4 + $0x40] sm:$0xff]
        %v1248 = vld [vmem:[#allocation4 + $0x48] sm:$0xff]
        %v1249 = vld [vmem:[#allocation4 + $0x50] sm:$0xff]
        %v1250 = vld [vmem:[#allocation4 + $0x58] sm:$0xff]
        %v1251 = vld [vmem:[#allocation4 + $0x60] sm:$0xff]
        %v1252 = vld [vmem:[#allocation4 + $0x68] sm:$0xff]
        %v1253 = vld [vmem:[#allocation4 + $0x70] sm:$0xff]
        %v1254 = vld [vmem:[#allocation4 + $0x78] sm:$0xff]
        %v1255 = vmul.f32 %v920, %v1223
        %v1256 = vmul.f32 %v925, %v1224
        %v1257 = vmul.f32 %v930, %v1225
        %v1258 = vmul.f32 %v935, %v1226
        %v1259 = vmul.f32 %v940, %v1227
        %v1260 = vmul.f32 %v945, %v1228
        %v1261 = vmul.f32 %v950, %v1229
        %v1262 = vmul.f32 %v955, %v1230
        %v1263 = vmul.f32 %v960, %v1231
        %v1264 = vmul.f32 %v965, %v1232
        %v1265 = vmul.f32 %v970, %v1233
        %v1266 = vmul.f32 %v975, %v1234
        %v1267 = vmul.f32 %v980, %v1235
        %v1268 = vmul.f32 %v985, %v1236
        %v1269 = vmul.f32 %v990, %v1237
        %v1270 = vmul.f32 %v995, %v1238
        %v1271 = vmul.f32 %v1255, 1.442695
        %v1272 = vpow.pop %v1271
        %v1273 = vmul.f32 %v1256, 1.442695
        %v1274 = vpow.pop %v1273
        %v1275 = vmul.f32 %v1257, 1.442695
        %v1276 = vpow.pop %v1275
        %v1277 = vmul.f32 %v1258, 1.442695
        %v1278 = vpow.pop %v1277
        %v1279 = vmul.f32 %v1259, 1.442695
        %v1280 = vpow.pop %v1279
        %v1281 = vmul.f32 %v1260, 1.442695
        %v1282 = vpow.pop %v1281
        %v1283 = vmul.f32 %v1261, 1.442695
        %v1284 = vpow.pop %v1283
        %v1285 = vmul.f32 %v1262, 1.442695
        %v1286 = vpow.pop %v1285
        %v1287 = vmul.f32 %v1263, 1.442695
        %v1288 = vpow.pop %v1287
        %v1289 = vmul.f32 %v1264, 1.442695
        %v1290 = vpow.pop %v1289
        %v1291 = vmul.f32 %v1265, 1.442695
        %v1292 = vpow.pop %v1291
        %v1293 = vmul.f32 %v1266, 1.442695
        %v1294 = vpow.pop %v1293
        %v1295 = vmul.f32 %v1267, 1.442695
        %v1296 = vpow.pop %v1295
        %v1297 = vmul.f32 %v1268, 1.442695
        %v1298 = vpow.pop %v1297
        %v1299 = vmul.f32 %v1269, 1.442695
        %v1300 = vpow.pop %v1299
        %v1301 = vmul.f32 %v1270, 1.442695
        %v1302 = vpow.pop %v1301
        %1303 = vadd.xlane.f32.xlu0 %v1272
        %v1304 = vpop.xlane.xlu0 %1303
        %1305 = vadd.xlane.f32.xlu0 %v1274
        %v1306 = vpop.xlane.xlu0 %1305
        %1307 = vadd.xlane.f32.xlu0 %v1276
        %v1308 = vpop.xlane.xlu0 %1307
        %1309 = vadd.xlane.f32.xlu0 %v1278
        %v1310 = vpop.xlane.xlu0 %1309
        %1311 = vadd.xlane.f32.xlu0 %v1280
        %v1312 = vpop.xlane.xlu0 %1311
        %1313 = vadd.xlane.f32.xlu0 %v1282
        %v1314 = vpop.xlane.xlu0 %1313
        %1315 = vadd.xlane.f32.xlu0 %v1284
        %v1316 = vpop.xlane.xlu0 %1315
        %1317 = vadd.xlane.f32.xlu0 %v1286
        %v1318 = vpop.xlane.xlu0 %1317
        %1319 = vadd.xlane.f32.xlu0 %v1288
        %v1320 = vpop.xlane.xlu0 %1319
        %1321 = vadd.xlane.f32.xlu0 %v1290
        %v1322 = vpop.xlane.xlu0 %1321
        %1323 = vadd.xlane.f32.xlu0 %v1292
        %v1324 = vpop.xlane.xlu0 %1323
        %1325 = vadd.xlane.f32.xlu0 %v1294
        %v1326 = vpop.xlane.xlu0 %1325
        %1327 = vadd.xlane.f32.xlu0 %v1296
        %v1328 = vpop.xlane.xlu0 %1327
        %1329 = vadd.xlane.f32.xlu0 %v1298
        %v1330 = vpop.xlane.xlu0 %1329
        %1331 = vadd.xlane.f32.xlu0 %v1300
        %v1332 = vpop.xlane.xlu0 %1331
        %1333 = vadd.xlane.f32.xlu0 %v1302
        %v1334 = vpop.xlane.xlu0 %1333
        %v1335 = vadd.f32 %v1239, %v1304
        %v1336 = vadd.f32 %v1240, %v1306
        %v1337 = vadd.f32 %v1241, %v1308
        %v1338 = vadd.f32 %v1242, %v1310
        %v1339 = vadd.f32 %v1243, %v1312
        %v1340 = vadd.f32 %v1244, %v1314
        %v1341 = vadd.f32 %v1245, %v1316
        %v1342 = vadd.f32 %v1246, %v1318
        %v1343 = vadd.f32 %v1247, %v1320
        %v1344 = vadd.f32 %v1248, %v1322
        %v1345 = vadd.f32 %v1249, %v1324
        %v1346 = vadd.f32 %v1250, %v1326
        %v1347 = vadd.f32 %v1251, %v1328
        %v1348 = vadd.f32 %v1252, %v1330
        %v1349 = vadd.f32 %v1253, %v1332
        %v1350 = vadd.f32 %v1254, %v1334
        %vm1351 = vcmask 7168
        %1352 = vst.msk [vmem:[#allocation4] sm:$0xff] %vm1351, %v1335
        %1353 = vst.msk [vmem:[#allocation4 + $0x8] sm:$0xff] %vm1351, %v1336
        %1354 = vst.msk [vmem:[#allocation4 + $0x10] sm:$0xff] %vm1351, %v1337
        %1355 = vst.msk [vmem:[#allocation4 + $0x18] sm:$0xff] %vm1351, %v1338
        %1356 = vst.msk [vmem:[#allocation4 + $0x20] sm:$0xff] %vm1351, %v1339
        %1357 = vst.msk [vmem:[#allocation4 + $0x28] sm:$0xff] %vm1351, %v1340
        %1358 = vst.msk [vmem:[#allocation4 + $0x30] sm:$0xff] %vm1351, %v1341
        %1359 = vst.msk [vmem:[#allocation4 + $0x38] sm:$0xff] %vm1351, %v1342
        %1360 = vst.msk [vmem:[#allocation4 + $0x40] sm:$0xff] %vm1351, %v1343
        %1361 = vst.msk [vmem:[#allocation4 + $0x48] sm:$0xff] %vm1351, %v1344
        %1362 = vst.msk [vmem:[#allocation4 + $0x50] sm:$0xff] %vm1351, %v1345
        %1363 = vst.msk [vmem:[#allocation4 + $0x58] sm:$0xff] %vm1351, %v1346
        %1364 = vst.msk [vmem:[#allocation4 + $0x60] sm:$0xff] %vm1351, %v1347
        %1365 = vst.msk [vmem:[#allocation4 + $0x68] sm:$0xff] %vm1351, %v1348
        %1366 = vst.msk [vmem:[#allocation4 + $0x70] sm:$0xff] %vm1351, %v1349
        %1367 = vst.msk [vmem:[#allocation4 + $0x78] sm:$0xff] %vm1351, %v1350
        %p1368 = scmp.eq.s32.totalorder %s24, %s25
        // Predicated region
        $region49: #{tpu_custom_call.1} parent=31 // pred_check
          %p1369 = pneg %p1368
        $region50: #{tpu_custom_call.1} parent=31 // pred_check_branch
          %1371 = sbr.rel (%p1369) target = $region52
        $region51: #{tpu_custom_call.1} parent=31 // pred_region
          %v1372 = vld [vmem:[#allocation2] sm:$0xff]
          %v1373 = vld [vmem:[#allocation2 + $0x8] sm:$0xff]
          %v1374 = vld [vmem:[#allocation2 + $0x10] sm:$0xff]
          %v1375 = vld [vmem:[#allocation2 + $0x18] sm:$0xff]
          %v1376 = vld [vmem:[#allocation2 + $0x20] sm:$0xff]
          %v1377 = vld [vmem:[#allocation2 + $0x28] sm:$0xff]
          %v1378 = vld [vmem:[#allocation2 + $0x30] sm:$0xff]
          %v1379 = vld [vmem:[#allocation2 + $0x38] sm:$0xff]
          %v1380 = vld [vmem:[#allocation2 + $0x40] sm:$0xff]
          %v1381 = vld [vmem:[#allocation2 + $0x48] sm:$0xff]
          %v1382 = vld [vmem:[#allocation2 + $0x50] sm:$0xff]
          %v1383 = vld [vmem:[#allocation2 + $0x58] sm:$0xff]
          %v1384 = vld [vmem:[#allocation2 + $0x60] sm:$0xff]
          %v1385 = vld [vmem:[#allocation2 + $0x68] sm:$0xff]
          %v1386 = vld [vmem:[#allocation2 + $0x70] sm:$0xff]
          %v1387 = vld [vmem:[#allocation2 + $0x78] sm:$0xff]
          %v1388 = vmul.f32 %v1372, %v1372
          %v1389 = vmul.f32 %v1373, %v1373
          %v1390 = vmul.f32 %v1374, %v1374
          %v1391 = vmul.f32 %v1375, %v1375
          %v1392 = vmul.f32 %v1376, %v1376
          %v1393 = vmul.f32 %v1377, %v1377
          %v1394 = vmul.f32 %v1378, %v1378
          %v1395 = vmul.f32 %v1379, %v1379
          %v1396 = vmul.f32 %v1380, %v1380
          %v1397 = vmul.f32 %v1381, %v1381
          %v1398 = vmul.f32 %v1382, %v1382
          %v1399 = vmul.f32 %v1383, %v1383
          %v1400 = vmul.f32 %v1384, %v1384
          %v1401 = vmul.f32 %v1385, %v1385
          %v1402 = vmul.f32 %v1386, %v1386
          %v1403 = vmul.f32 %v1387, %v1387
          %v1404 = vadd.f32 %v1388, 1e-06
          %v1405 = vadd.f32 %v1389, 1e-06
          %v1406 = vadd.f32 %v1390, 1e-06
          %v1407 = vadd.f32 %v1391, 1e-06
          %v1408 = vadd.f32 %v1392, 1e-06
          %v1409 = vadd.f32 %v1393, 1e-06
          %v1410 = vadd.f32 %v1394, 1e-06
          %v1411 = vadd.f32 %v1395, 1e-06
          %v1412 = vadd.f32 %v1396, 1e-06
          %v1413 = vadd.f32 %v1397, 1e-06
          %v1414 = vadd.f32 %v1398, 1e-06
          %v1415 = vadd.f32 %v1399, 1e-06
          %v1416 = vadd.f32 %v1400, 1e-06
          %v1417 = vadd.f32 %v1401, 1e-06
          %v1418 = vadd.f32 %v1402, 1e-06
          %v1419 = vadd.f32 %v1403, 1e-06
          %v1420 = vrcp.pop %v1404
          %v1421 = vrcp.pop %v1405
          %v1422 = vrcp.pop %v1406
          %v1423 = vrcp.pop %v1407
          %v1424 = vrcp.pop %v1408
          %v1425 = vrcp.pop %v1409
          %v1426 = vrcp.pop %v1410
          %v1427 = vrcp.pop %v1411
          %v1428 = vrcp.pop %v1412
          %v1429 = vrcp.pop %v1413
          %v1430 = vrcp.pop %v1414
          %v1431 = vrcp.pop %v1415
          %v1432 = vrcp.pop %v1416
          %v1433 = vrcp.pop %v1417
          %v1434 = vrcp.pop %v1418
          %v1435 = vrcp.pop %v1419
          %v1436 = vmul.f32 %v1388, %v1420
          %v1437 = vmul.f32 %v1389, %v1421
          %v1438 = vmul.f32 %v1390, %v1422
          %v1439 = vmul.f32 %v1391, %v1423
          %v1440 = vmul.f32 %v1392, %v1424
          %v1441 = vmul.f32 %v1393, %v1425
          %v1442 = vmul.f32 %v1394, %v1426
          %v1443 = vmul.f32 %v1395, %v1427
          %v1444 = vmul.f32 %v1396, %v1428
          %v1445 = vmul.f32 %v1397, %v1429
          %v1446 = vmul.f32 %v1398, %v1430
          %v1447 = vmul.f32 %v1399, %v1431
          %v1448 = vmul.f32 %v1400, %v1432
          %v1449 = vmul.f32 %v1401, %v1433
          %v1450 = vmul.f32 %v1402, %v1434
          %v1451 = vmul.f32 %v1403, %v1435
          %v1452 = vmul.f32 %v1436, 1.442695
          %v1453 = vpow.pop %v1452
          %v1454 = vmul.f32 %v1437, 1.442695
          %v1455 = vpow.pop %v1454
          %v1456 = vmul.f32 %v1438, 1.442695
          %v1457 = vpow.pop %v1456
          %v1458 = vmul.f32 %v1439, 1.442695
          %v1459 = vpow.pop %v1458
          %v1460 = vmul.f32 %v1440, 1.442695
          %v1461 = vpow.pop %v1460
          %v1462 = vmul.f32 %v1441, 1.442695
          %v1463 = vpow.pop %v1462
          %v1464 = vmul.f32 %v1442, 1.442695
          %v1465 = vpow.pop %v1464
          %v1466 = vmul.f32 %v1443, 1.442695
          %v1467 = vpow.pop %v1466
          %v1468 = vmul.f32 %v1444, 1.442695
          %v1469 = vpow.pop %v1468
          %v1470 = vmul.f32 %v1445, 1.442695
          %v1471 = vpow.pop %v1470
          %v1472 = vmul.f32 %v1446, 1.442695
          %v1473 = vpow.pop %v1472
          %v1474 = vmul.f32 %v1447, 1.442695
          %v1475 = vpow.pop %v1474
          %v1476 = vmul.f32 %v1448, 1.442695
          %v1477 = vpow.pop %v1476
          %v1478 = vmul.f32 %v1449, 1.442695
          %v1479 = vpow.pop %v1478
          %v1480 = vmul.f32 %v1450, 1.442695
          %v1481 = vpow.pop %v1480
          %v1482 = vmul.f32 %v1451, 1.442695
          %v1483 = vpow.pop %v1482
          %v1484 = vld [vmem:[#allocation4] sm:$0xff]
          %v1485 = vld [vmem:[#allocation4 + $0x8] sm:$0xff]
          %v1486 = vld [vmem:[#allocation4 + $0x10] sm:$0xff]
          %v1487 = vld [vmem:[#allocation4 + $0x18] sm:$0xff]
          %v1488 = vld [vmem:[#allocation4 + $0x20] sm:$0xff]
          %v1489 = vld [vmem:[#allocation4 + $0x28] sm:$0xff]
          %v1490 = vld [vmem:[#allocation4 + $0x30] sm:$0xff]
          %v1491 = vld [vmem:[#allocation4 + $0x38] sm:$0xff]
          %v1492 = vld [vmem:[#allocation4 + $0x40] sm:$0xff]
          %v1493 = vld [vmem:[#allocation4 + $0x48] sm:$0xff]
          %v1494 = vld [vmem:[#allocation4 + $0x50] sm:$0xff]
          %v1495 = vld [vmem:[#allocation4 + $0x58] sm:$0xff]
          %v1496 = vld [vmem:[#allocation4 + $0x60] sm:$0xff]
          %v1497 = vld [vmem:[#allocation4 + $0x68] sm:$0xff]
          %v1498 = vld [vmem:[#allocation4 + $0x70] sm:$0xff]
          %v1499 = vld [vmem:[#allocation4 + $0x78] sm:$0xff]
          %v1500 = vsub.f32 1.0, %v1453
          %v1501 = vsub.f32 1.0, %v1455
          %v1502 = vsub.f32 1.0, %v1457
          %v1503 = vsub.f32 1.0, %v1459
          %v1504 = vsub.f32 1.0, %v1461
          %v1505 = vsub.f32 1.0, %v1463
          %v1506 = vsub.f32 1.0, %v1465
          %v1507 = vsub.f32 1.0, %v1467
          %v1508 = vsub.f32 1.0, %v1469
          %v1509 = vsub.f32 1.0, %v1471
          %v1510 = vsub.f32 1.0, %v1473
          %v1511 = vsub.f32 1.0, %v1475
          %v1512 = vsub.f32 1.0, %v1477
          %v1513 = vsub.f32 1.0, %v1479
          %v1514 = vsub.f32 1.0, %v1481
          %v1515 = vsub.f32 1.0, %v1483
          %v1516 = vadd.f32 %v1484, %v1500
          %v1517 = vadd.f32 %v1485, %v1501
          %v1518 = vadd.f32 %v1486, %v1502
          %v1519 = vadd.f32 %v1487, %v1503
          %v1520 = vadd.f32 %v1488, %v1504
          %v1521 = vadd.f32 %v1489, %v1505
          %v1522 = vadd.f32 %v1490, %v1506
          %v1523 = vadd.f32 %v1491, %v1507
          %v1524 = vadd.f32 %v1492, %v1508
          %v1525 = vadd.f32 %v1493, %v1509
          %v1526 = vadd.f32 %v1494, %v1510
          %v1527 = vadd.f32 %v1495, %v1511
          %v1528 = vadd.f32 %v1496, %v1512
          %v1529 = vadd.f32 %v1497, %v1513
          %v1530 = vadd.f32 %v1498, %v1514
          %v1531 = vadd.f32 %v1499, %v1515
          %1532 = vst.msk [vmem:[#allocation4] sm:$0xff] %vm1351, %v1516
          %1533 = vst.msk [vmem:[#allocation4 + $0x8] sm:$0xff] %vm1351, %v1517
          %1534 = vst.msk [vmem:[#allocation4 + $0x10] sm:$0xff] %vm1351, %v1518
          %1535 = vst.msk [vmem:[#allocation4 + $0x18] sm:$0xff] %vm1351, %v1519
          %1536 = vst.msk [vmem:[#allocation4 + $0x20] sm:$0xff] %vm1351, %v1520
          %1537 = vst.msk [vmem:[#allocation4 + $0x28] sm:$0xff] %vm1351, %v1521
          %1538 = vst.msk [vmem:[#allocation4 + $0x30] sm:$0xff] %vm1351, %v1522
          %1539 = vst.msk [vmem:[#allocation4 + $0x38] sm:$0xff] %vm1351, %v1523
          %1540 = vst.msk [vmem:[#allocation4 + $0x40] sm:$0xff] %vm1351, %v1524
          %1541 = vst.msk [vmem:[#allocation4 + $0x48] sm:$0xff] %vm1351, %v1525
          %1542 = vst.msk [vmem:[#allocation4 + $0x50] sm:$0xff] %vm1351, %v1526
          %1543 = vst.msk [vmem:[#allocation4 + $0x58] sm:$0xff] %vm1351, %v1527
          %1544 = vst.msk [vmem:[#allocation4 + $0x60] sm:$0xff] %vm1351, %v1528
          %1545 = vst.msk [vmem:[#allocation4 + $0x68] sm:$0xff] %vm1351, %v1529
          %1546 = vst.msk [vmem:[#allocation4 + $0x70] sm:$0xff] %vm1351, %v1530
          %1547 = vst.msk [vmem:[#allocation4 + $0x78] sm:$0xff] %vm1351, %v1531
        $region52: #{tpu_custom_call.1} parent=31 // pred_fallthru
          _
        %p1548 = scmp.eq.s32.totalorder %s25, 1
        // Predicated region
        $region53: #{tpu_custom_call.1} parent=31 // pred_check
          %p1549 = pneg %p1548
        $region54: #{tpu_custom_call.1} parent=31 // pred_check_branch
          %1551 = sbr.rel (%p1549) target = $region56
        $region55: #{tpu_custom_call.1} parent=31 // pred_region
          %v1552 = vld [vmem:[#allocation4] sm:$0xff]
          %v1553 = vld [vmem:[#allocation4 + $0x8] sm:$0xff]
          %v1554 = vld [vmem:[#allocation4 + $0x10] sm:$0xff]
          %v1555 = vld [vmem:[#allocation4 + $0x18] sm:$0xff]
          %v1556 = vld [vmem:[#allocation4 + $0x20] sm:$0xff]
          %v1557 = vld [vmem:[#allocation4 + $0x28] sm:$0xff]
          %v1558 = vld [vmem:[#allocation4 + $0x30] sm:$0xff]
          %v1559 = vld [vmem:[#allocation4 + $0x38] sm:$0xff]
          %v1560 = vld [vmem:[#allocation4 + $0x40] sm:$0xff]
          %v1561 = vld [vmem:[#allocation4 + $0x48] sm:$0xff]
          %v1562 = vld [vmem:[#allocation4 + $0x50] sm:$0xff]
          %v1563 = vld [vmem:[#allocation4 + $0x58] sm:$0xff]
          %v1564 = vld [vmem:[#allocation4 + $0x60] sm:$0xff]
          %v1565 = vld [vmem:[#allocation4 + $0x68] sm:$0xff]
          %v1566 = vld [vmem:[#allocation4 + $0x70] sm:$0xff]
          %v1567 = vld [vmem:[#allocation4 + $0x78] sm:$0xff]
          %v1568 = vlog2.pop %v1552
          %v1569 = vmul.f32 %v1568, 0.6931472
          %v1570 = vlog2.pop %v1553
          %v1571 = vmul.f32 %v1570, 0.6931472
          %v1572 = vlog2.pop %v1554
          %v1573 = vmul.f32 %v1572, 0.6931472
          %v1574 = vlog2.pop %v1555
          %v1575 = vmul.f32 %v1574, 0.6931472
          %v1576 = vlog2.pop %v1556
          %v1577 = vmul.f32 %v1576, 0.6931472
          %v1578 = vlog2.pop %v1557
          %v1579 = vmul.f32 %v1578, 0.6931472
          %v1580 = vlog2.pop %v1558
          %v1581 = vmul.f32 %v1580, 0.6931472
          %v1582 = vlog2.pop %v1559
          %v1583 = vmul.f32 %v1582, 0.6931472
          %v1584 = vlog2.pop %v1560
          %v1585 = vmul.f32 %v1584, 0.6931472
          %v1586 = vlog2.pop %v1561
          %v1587 = vmul.f32 %v1586, 0.6931472
          %v1588 = vlog2.pop %v1562
          %v1589 = vmul.f32 %v1588, 0.6931472
          %v1590 = vlog2.pop %v1563
          %v1591 = vmul.f32 %v1590, 0.6931472
          %v1592 = vlog2.pop %v1564
          %v1593 = vmul.f32 %v1592, 0.6931472
          %v1594 = vlog2.pop %v1565
          %v1595 = vmul.f32 %v1594, 0.6931472
          %v1596 = vlog2.pop %v1566
          %v1597 = vmul.f32 %v1596, 0.6931472
          %v1598 = vlog2.pop %v1567
          %v1599 = vmul.f32 %v1598, 0.6931472
          %v1600 = vld [vmem:[#allocation3] sm:$0xff]
          %v1601 = vld [vmem:[#allocation3 + $0x8] sm:$0xff]
          %v1602 = vld [vmem:[#allocation3 + $0x10] sm:$0xff]
          %v1603 = vld [vmem:[#allocation3 + $0x18] sm:$0xff]
          %v1604 = vld [vmem:[#allocation3 + $0x20] sm:$0xff]
          %v1605 = vld [vmem:[#allocation3 + $0x28] sm:$0xff]
          %v1606 = vld [vmem:[#allocation3 + $0x30] sm:$0xff]
          %v1607 = vld [vmem:[#allocation3 + $0x38] sm:$0xff]
          %v1608 = vld [vmem:[#allocation3 + $0x40] sm:$0xff]
          %v1609 = vld [vmem:[#allocation3 + $0x48] sm:$0xff]
          %v1610 = vld [vmem:[#allocation3 + $0x50] sm:$0xff]
          %v1611 = vld [vmem:[#allocation3 + $0x58] sm:$0xff]
          %v1612 = vld [vmem:[#allocation3 + $0x60] sm:$0xff]
          %v1613 = vld [vmem:[#allocation3 + $0x68] sm:$0xff]
          %v1614 = vld [vmem:[#allocation3 + $0x70] sm:$0xff]
          %v1615 = vld [vmem:[#allocation3 + $0x78] sm:$0xff]
          %v1616 = vsub.f32 %v1569, %v1600
          %v1617 = vsub.f32 %v1571, %v1601
          %v1618 = vsub.f32 %v1573, %v1602
          %v1619 = vsub.f32 %v1575, %v1603
          %v1620 = vsub.f32 %v1577, %v1604
          %v1621 = vsub.f32 %v1579, %v1605
          %v1622 = vsub.f32 %v1581, %v1606
          %v1623 = vsub.f32 %v1583, %v1607
          %v1624 = vsub.f32 %v1585, %v1608
          %v1625 = vsub.f32 %v1587, %v1609
          %v1626 = vsub.f32 %v1589, %v1610
          %v1627 = vsub.f32 %v1591, %v1611
          %v1628 = vsub.f32 %v1593, %v1612
          %v1629 = vsub.f32 %v1595, %v1613
          %v1630 = vsub.f32 %v1597, %v1614
          %v1631 = vsub.f32 %v1599, %v1615
          %1632 = vst.msk [vmem:[%s334] sm:$0xff] %vm1351, %v1616
          %1633 = vst.msk [vmem:[%s334 + $0x8] sm:$0xff] %vm1351, %v1617
          %1634 = vst.msk [vmem:[%s334 + $0x10] sm:$0xff] %vm1351, %v1618
          %1635 = vst.msk [vmem:[%s334 + $0x18] sm:$0xff] %vm1351, %v1619
          %1636 = vst.msk [vmem:[%s334 + $0x20] sm:$0xff] %vm1351, %v1620
          %1637 = vst.msk [vmem:[%s334 + $0x28] sm:$0xff] %vm1351, %v1621
          %1638 = vst.msk [vmem:[%s334 + $0x30] sm:$0xff] %vm1351, %v1622
          %1639 = vst.msk [vmem:[%s334 + $0x38] sm:$0xff] %vm1351, %v1623
          %1640 = vst.msk [vmem:[%s334 + $0x40] sm:$0xff] %vm1351, %v1624
          %1641 = vst.msk [vmem:[%s334 + $0x48] sm:$0xff] %vm1351, %v1625
          %1642 = vst.msk [vmem:[%s334 + $0x50] sm:$0xff] %vm1351, %v1626
          %1643 = vst.msk [vmem:[%s334 + $0x58] sm:$0xff] %vm1351, %v1627
          %1644 = vst.msk [vmem:[%s334 + $0x60] sm:$0xff] %vm1351, %v1628
          %1645 = vst.msk [vmem:[%s334 + $0x68] sm:$0xff] %vm1351, %v1629
          %1646 = vst.msk [vmem:[%s334 + $0x70] sm:$0xff] %vm1351, %v1630
          %1647 = vst.msk [vmem:[%s334 + $0x78] sm:$0xff] %vm1351, %v1631
        $region56: #{tpu_custom_call.1} parent=31 // pred_fallthru
          _
        %s1648 = smul.u32 16, %s24
        %p1649 = scmp.lt.s32.totalorder %s1648, 31
        %s1650 = scalar_select %p1649, %s1648, 31
        %s1651 = smul.addr %s1650, 8
        %s1652 = scalar_lea.vmem %s3, %s1651
        // Predicated region
        $region57: #{tpu_custom_call.1} parent=31 // pred_check
          %p1653 = pneg %p154
        $region58: #{tpu_custom_call.1} parent=31 // pred_check_branch
          %1655 = sbr.rel (%p1653) target = $region60
        $region59: #{tpu_custom_call.1} parent=31 // pred_region
          %s1656 = smul.u32 16, %s24
        $region60: #{tpu_custom_call.1} parent=31 // pred_fallthru
          _
      $region32: #{tpu_custom_call.1} parent=5 // pred_fallthru
        _
      %p1657 = scmp.le.s32.totalorder 2, %s15
      // Predicated region
      $region61: #{tpu_custom_call.1} parent=5 // pred_check
        %p1658 = pneg %p1657
      $region62: #{tpu_custom_call.1} parent=5 // pred_check_branch
        %1660 = sbr.rel (%p1658) target = $region64
      $region63: #{tpu_custom_call.1} parent=5 // pred_region
        %s1661 = ssub.s32 %s15, 2
        // Predicated region
        $region65: #{tpu_custom_call.1} parent=63 // pred_check
          %p1662 = pneg %p160
        $region66: #{tpu_custom_call.1} parent=63 // pred_check_branch
          %1664 = sbr.rel (%p1662) target = $region68
        $region67: #{tpu_custom_call.1} parent=63 // pred_region
          %s1665 = smul.u32 16, %s26
          %p1666 = scmp.lt.s32.totalorder %s1665, 31
          %s1667 = scalar_select %p1666, %s1665, 31
          %s1668 = smul.addr %s1667, 8
          %s1669 = scalar_lea.vmem %s3, %s1668
        $region68: #{tpu_custom_call.1} parent=63 // pred_fallthru
          _
      $region64: #{tpu_custom_call.1} parent=5 // pred_fallthru
        _
    $region6: #{tpu_custom_call.1} parent=1 // loop_footer
      %s19 = sadd.s32 1, %s15
    $region7: #{tpu_custom_call.1} parent=1 // loop_footer_branch
      %14 = sbr.rel target = $region3
    $region8: #{tpu_custom_call.1} parent=1 // loop_exit
      _
    %1670 = vsyncpa [#allocation6], 1
    %s1671 = scalar_lea.sflag [#allocation6], 1
    %1672 = vsyncpa %s1671, 1
    %1673 = vsyncpa [#allocation8], 1
    %s1674 = scalar_lea.sflag [#allocation8], 1
    %1675 = vsyncpa %s1674, 1

</llo_original>
